<compile_context>
chip_gen: v7x
topology: tpu7x:2x2x1
jax: 0.10.0
libtpu: 0.0.40
codegen_flags: <defaults>
</compile_context>

<pallas_src>
import jax
import jax.numpy as jnp
from jax import lax
from jax.experimental import pallas as pl
from jax.experimental.pallas import tpu as pltpu

# ---- small, module-consistent hyper-parameters -------------------------------
B = 2                       # batch
SEQ = 16                    # bert_seq_len
HID = 32                    # bert hidden_size
C_OUT = 8                   # conv_out_channels (== BiLSTM sequence length)
K = 3                       # conv_kernel_size
L_OUT = SEQ - (K - 1)       # conv output length (stride=1, pad=0, dilation=1) = 14
BILSTM_IN = 32              # bilstm_in_features
H_L = BILSTM_IN // 2        # LSTM hidden per direction = 16
G = 8 * H_L                 # combined fwd+bwd gate width = 128 (one full lane vreg)
N_LABELS = 4                # no_out_labels
P_DROP = 0.3
VOCAB = 100


def _kernel(x_ref, dm_ref, wcol_ref, cb_ref, wxf_ref, wxb_ref, bx_ref,
            whh_ref, fcw_ref, fcb_ref, out_ref, h_all):
    # ---------------- Dropout (inverted, train-mode; mask precomputed) --------
    xd = x_ref[...] * dm_ref[...]                         # (B, SEQ, HID)

    # ---------------- Conv1d via im2col ---------------------------------------
    # out[b, c, l] = bias[c] + sum_{h,k} W[c,h,k] * x[b, l+k, h]
    rows = []
    for b in range(B):                                    # B static -> unrolled
        im2col = jnp.concatenate(
            [xd[b, k:k + L_OUT, :] for k in range(K)], axis=-1)   # (L_OUT, K*HID)
        conv_b = lax.dot_general(
            wcol_ref[...], im2col, (((1,), (1,)), ((), ())),
            preferred_element_type=jnp.float32)           # (C_OUT, L_OUT)
        rows.append(conv_b + cb_ref[...])
    conv_bt = jnp.concatenate(rows, axis=0)               # (B*C_OUT, L_OUT), rows (b, t)

    # ---------------- Hoisted LSTM input projections (both directions) --------
    # Gate column layout (width 128): [i_f,i_b,f_f,f_b,o_f,o_b,g_f,g_b], 16 each.
    xg_f = (jnp.dot(conv_bt, wxf_ref[...], preferred_element_type=jnp.float32)
            + bx_ref[...]).reshape(B, C_OUT, G)           # fwd cols + all biases
    xg_b = jnp.dot(conv_bt, wxb_ref[...],
                   preferred_element_type=jnp.float32).reshape(B, C_OUT, G)

    # ---------------- Fused bidirectional recurrence (statically unrolled) ----
    whh = whh_ref[...]                                    # (2*H_L, 128) block-diagonal
    h_cat = jnp.zeros((B, 2 * H_L), jnp.float32)          # [h_fwd | h_bwd]
    c_cat = jnp.zeros((B, 2 * H_L), jnp.float32)          # [c_fwd | c_bwd]
    for s in range(C_OUT):                                # 8 steps, fwd+bwd together
        r = C_OUT - 1 - s                                 # backward time index
        xg_s = xg_f[:, s, :] + xg_b[:, r, :]              # (B, 128) precomputed gates(x)
        gates = xg_s + jnp.dot(h_cat, whh, preferred_element_type=jnp.float32)
        sg = jax.nn.sigmoid(gates[:, 0:6 * H_L])          # i|f|o  (fwd,bwd interleaved)
        gg = jnp.tanh(gates[:, 6 * H_L:G])                # g      (fwd,bwd)
        i_cat = sg[:, 0:2 * H_L]
        f_cat = sg[:, 2 * H_L:4 * H_L]
        o_cat = sg[:, 4 * H_L:6 * H_L]
        c_cat = f_cat * c_cat + i_cat * gg
        h_cat = o_cat * jnp.tanh(c_cat)
        h_all[:, s, 0:H_L] = h_cat[:, 0:H_L]              # forward output for time s
        h_all[:, r, H_L:2 * H_L] = h_cat[:, H_L:2 * H_L]  # backward output for time r

    # ---------------- Final Linear, output directly in (B, C_OUT, N_LABELS) ---
    lstm_out = h_all[...].reshape(B * C_OUT, 2 * H_L)     # (16, 32)
    fc = jnp.dot(lstm_out, fcw_ref[...],
                 preferred_element_type=jnp.float32) + fcb_ref[...]
    out_ref[...] = fc.reshape(B, C_OUT, N_LABELS)


def init_params(key):
    ks = jax.random.split(key, 13)
    s = 0.1
    return {
        "emb":    jax.random.normal(ks[0], (VOCAB, HID), jnp.float32) * s,
        "conv_w": jax.random.normal(ks[1], (C_OUT, HID, K), jnp.float32) * s,
        "conv_b": jax.random.normal(ks[2], (C_OUT,), jnp.float32) * s,
        "w_ih_f": jax.random.normal(ks[3], (4 * H_L, L_OUT), jnp.float32) * s,
        "w_hh_f": jax.random.normal(ks[4], (4 * H_L, H_L), jnp.float32) * s,
        "b_ih_f": jax.random.normal(ks[5], (4 * H_L,), jnp.float32) * s,
        "b_hh_f": jax.random.normal(ks[6], (4 * H_L,), jnp.float32) * s,
        "w_ih_b": jax.random.normal(ks[7], (4 * H_L, L_OUT), jnp.float32) * s,
        "w_hh_b": jax.random.normal(ks[8], (4 * H_L, H_L), jnp.float32) * s,
        "b_ih_b": jax.random.normal(ks[9], (4 * H_L,), jnp.float32) * s,
        "b_hh_b": jax.random.normal(ks[10], (4 * H_L,), jnp.float32) * s,
        "fc_w":   jax.random.normal(ks[11], (N_LABELS, BILSTM_IN), jnp.float32) * s,
        "fc_b":   jax.random.normal(ks[12], (N_LABELS,), jnp.float32) * s,
    }


def _gate_blocks(w):
    """w: (4*H_L, IN), PyTorch row order [i; f; g; o] -> (IN, H_L) column blocks."""
    wt = w.T
    return (wt[:, 0:H_L], wt[:, H_L:2 * H_L],
            wt[:, 2 * H_L:3 * H_L], wt[:, 3 * H_L:4 * H_L])   # i, f, g, o


def forward(ids, mask, params, drop_key):
    # TODO(synk): the full BERT encoder (self.bert) has no clean Pallas equivalent
    # here; a deterministic embedding lookup masked by `mask` stands in for
    # bert(ids, attention_mask=mask)[0] (last_hidden_state, shape (B, SEQ, HID)).
    x = params["emb"][ids] * mask[..., None].astype(jnp.float32)     # (B, SEQ, HID)

    # Train-mode inverted-dropout keep mask, generated wrapper-side (no in-kernel PRNG).
    keep = jax.random.bernoulli(drop_key, 1.0 - P_DROP, (B, SEQ, HID))
    dmask = keep.astype(jnp.float32) * (1.0 / (1.0 - P_DROP))

    # Conv weights: wcol[c, k*HID + h] = conv_w[c, h, k]
    wcol = jnp.transpose(params["conv_w"], (0, 2, 1)).reshape(C_OUT, K * HID)
    cb = jnp.broadcast_to(params["conv_b"][:, None], (C_OUT, L_OUT))

    # LSTM weights, reordered into 128-wide gate slabs [i_f,i_b,f_f,f_b,o_f,o_b,g_f,g_b]
    iF, fF, gF, oF = _gate_blocks(params["w_ih_f"])                   # (L_OUT, H_L) each
    iB, fB, gB, oB = _gate_blocks(params["w_ih_b"])
    Zx = jnp.zeros((L_OUT, H_L), jnp.float32)
    wxf = jnp.concatenate([iF, Zx, fF, Zx, oF, Zx, gF, Zx], axis=1)   # (L_OUT, 128)
    wxb = jnp.concatenate([Zx, iB, Zx, fB, Zx, oB, Zx, gB], axis=1)   # (L_OUT, 128)

    hiF, hfF, hgF, hoF = _gate_blocks(params["w_hh_f"])               # (H_L, H_L) each
    hiB, hfB, hgB, hoB = _gate_blocks(params["w_hh_b"])
    Zh = jnp.zeros((H_L, H_L), jnp.float32)
    whh_bd = jnp.concatenate([
        jnp.concatenate([hiF, Zh, hfF, Zh, hoF, Zh, hgF, Zh], axis=1),   # rows: h_fwd
        jnp.concatenate([Zh, hiB, Zh, hfB, Zh, hoB, Zh, hgB], axis=1),   # rows: h_bwd
    ], axis=0)                                                           # (2*H_L, 128)

    bvF = params["b_ih_f"] + params["b_hh_f"]
    bvB = params["b_ih_b"] + params["b_hh_b"]
    bx = jnp.concatenate([
        bvF[0:H_L], bvB[0:H_L],                       # i_f, i_b
        bvF[H_L:2 * H_L], bvB[H_L:2 * H_L],           # f_f, f_b
        bvF[3 * H_L:4 * H_L], bvB[3 * H_L:4 * H_L],   # o_f, o_b
        bvF[2 * H_L:3 * H_L], bvB[2 * H_L:3 * H_L],   # g_f, g_b
    ]).reshape(1, G)

    fcw = params["fc_w"].T                              # (2*H_L, N_LABELS)
    fcb = params["fc_b"].reshape(1, N_LABELS)

    vmem = pl.BlockSpec(memory_space=pltpu.MemorySpace.VMEM)
    out = pl.pallas_call(
        _kernel,
        out_shape=jax.ShapeDtypeStruct((B, C_OUT, N_LABELS), jnp.float32),
        in_specs=[vmem] * 10,
        out_specs=vmem,
        scratch_shapes=[
            pltpu.VMEM((B, C_OUT, 2 * H_L), jnp.float32),   # BiLSTM output (b, t, [fwd|bwd])
        ],
    )(x.astype(jnp.float32), dmask, wcol, cb, wxf, wxb, bx, whh_bd, fcw, fcb)

    # Already in PyTorch layout (B, C_OUT, N_LABELS); no wrapper transpose needed.
    return out


if __name__ == "__main__":
    root = jax.random.PRNGKey(0)
    k_param, k_ids, k_drop = jax.random.split(root, 3)
    params = init_params(k_param)

    ids = jax.random.randint(k_ids, (B, SEQ), 0, VOCAB, dtype=jnp.int32)
    mask = jnp.ones((B, SEQ), jnp.int32)

    fwd = jax.jit(forward)
    out = fwd(ids, mask, params, k_drop)
    out = jax.block_until_ready(out)

    assert out.shape == (B, C_OUT, N_LABELS), out.shape
    assert bool(jnp.all(jnp.isfinite(out)))
    print("KERNEL_OK")
</pallas_src>

<mosaic_0001>
module attributes {stable_mosaic.version = 11 : i64} {
  func.func @_kernel(%arg0: memref<2x16x32xf32, #tpu.memory_space<vmem>>, %arg1: memref<2x16x32xf32, #tpu.memory_space<vmem>>, %arg2: memref<8x96xf32, #tpu.memory_space<vmem>>, %arg3: memref<8x14xf32, #tpu.memory_space<vmem>>, %arg4: memref<14x128xf32, #tpu.memory_space<vmem>>, %arg5: memref<14x128xf32, #tpu.memory_space<vmem>>, %arg6: memref<1x128xf32, #tpu.memory_space<vmem>>, %arg7: memref<32x128xf32, #tpu.memory_space<vmem>>, %arg8: memref<32x4xf32, #tpu.memory_space<vmem>>, %arg9: memref<1x4xf32, #tpu.memory_space<vmem>>, %arg10: memref<2x8x4xf32, #tpu.memory_space<vmem>>, %arg11: memref<2x8x32xf32, #tpu.memory_space<vmem>>) attributes {dimension_semantics = [], scalar_prefetch = 0 : i64, scratch_operands = 1 : i64, tpu.core_type = #tpu.core_type<tc>} {
    %c0 = arith.constant 0 : index
    %c0_0 = arith.constant 0 : index
    %c0_1 = arith.constant 0 : index
    %0 = vector.load %arg0[%c0, %c0_0, %c0_1] : memref<2x16x32xf32, #tpu.memory_space<vmem>>, vector<2x16x32xf32>
    %c0_2 = arith.constant 0 : index
    %c0_3 = arith.constant 0 : index
    %c0_4 = arith.constant 0 : index
    %1 = vector.load %arg1[%c0_2, %c0_3, %c0_4] : memref<2x16x32xf32, #tpu.memory_space<vmem>>, vector<2x16x32xf32>
    %2 = arith.mulf %0, %1 : vector<2x16x32xf32>
    %3 = vector.extract_strided_slice %2 {offsets = [0, 0, 0], sizes = [1, 14, 32], strides = [1, 1, 1]} : vector<2x16x32xf32> to vector<1x14x32xf32>
    %4 = vector.shape_cast %3 : vector<1x14x32xf32> to vector<14x32xf32>
    %5 = vector.extract_strided_slice %2 {offsets = [0, 1, 0], sizes = [1, 14, 32], strides = [1, 1, 1]} : vector<2x16x32xf32> to vector<1x14x32xf32>
    %6 = vector.shape_cast %5 : vector<1x14x32xf32> to vector<14x32xf32>
    %7 = vector.extract_strided_slice %2 {offsets = [0, 2, 0], sizes = [1, 14, 32], strides = [1, 1, 1]} : vector<2x16x32xf32> to vector<1x14x32xf32>
    %8 = vector.shape_cast %7 : vector<1x14x32xf32> to vector<14x32xf32>
    %9 = tpu.concatenate %4, %6, %8 in 1 : vector<14x32xf32>, vector<14x32xf32>, vector<14x32xf32> -> vector<14x96xf32>
    %c0_5 = arith.constant 0 : index
    %c0_6 = arith.constant 0 : index
    %10 = vector.load %arg2[%c0_5, %c0_6] : memref<8x96xf32, #tpu.memory_space<vmem>>, vector<8x96xf32>
    %cst = arith.constant dense<0.000000e+00> : vector<8x14xf32>
    %11 = tpu.matmul %10, %9, %cst {dimension_numbers = #tpu.dot_dimension_numbers<[1], [1], [0], [0], [0, 0, 1, 0], [], []>} : vector<8x96xf32>, vector<14x96xf32>, vector<8x14xf32> -> vector<8x14xf32>
    %c0_7 = arith.constant 0 : index
    %c0_8 = arith.constant 0 : index
    %12 = vector.load %arg3[%c0_7, %c0_8] : memref<8x14xf32, #tpu.memory_space<vmem>>, vector<8x14xf32>
    %13 = arith.addf %11, %12 : vector<8x14xf32>
    %14 = vector.extract_strided_slice %2 {offsets = [1, 0, 0], sizes = [1, 14, 32], strides = [1, 1, 1]} : vector<2x16x32xf32> to vector<1x14x32xf32>
    %15 = vector.shape_cast %14 : vector<1x14x32xf32> to vector<14x32xf32>
    %16 = vector.extract_strided_slice %2 {offsets = [1, 1, 0], sizes = [1, 14, 32], strides = [1, 1, 1]} : vector<2x16x32xf32> to vector<1x14x32xf32>
    %17 = vector.shape_cast %16 : vector<1x14x32xf32> to vector<14x32xf32>
    %18 = vector.extract_strided_slice %2 {offsets = [1, 2, 0], sizes = [1, 14, 32], strides = [1, 1, 1]} : vector<2x16x32xf32> to vector<1x14x32xf32>
    %19 = vector.shape_cast %18 : vector<1x14x32xf32> to vector<14x32xf32>
    %20 = tpu.concatenate %15, %17, %19 in 1 : vector<14x32xf32>, vector<14x32xf32>, vector<14x32xf32> -> vector<14x96xf32>
    %c0_9 = arith.constant 0 : index
    %c0_10 = arith.constant 0 : index
    %21 = vector.load %arg2[%c0_9, %c0_10] : memref<8x96xf32, #tpu.memory_space<vmem>>, vector<8x96xf32>
    %cst_11 = arith.constant dense<0.000000e+00> : vector<8x14xf32>
    %22 = tpu.matmul %21, %20, %cst_11 {dimension_numbers = #tpu.dot_dimension_numbers<[1], [1], [0], [0], [0, 0, 1, 0], [], []>} : vector<8x96xf32>, vector<14x96xf32>, vector<8x14xf32> -> vector<8x14xf32>
    %c0_12 = arith.constant 0 : index
    %c0_13 = arith.constant 0 : index
    %23 = vector.load %arg3[%c0_12, %c0_13] : memref<8x14xf32, #tpu.memory_space<vmem>>, vector<8x14xf32>
    %24 = arith.addf %22, %23 : vector<8x14xf32>
    %25 = tpu.concatenate %13, %24 in 0 : vector<8x14xf32>, vector<8x14xf32> -> vector<16x14xf32>
    %c0_14 = arith.constant 0 : index
    %c0_15 = arith.constant 0 : index
    %26 = vector.load %arg4[%c0_14, %c0_15] : memref<14x128xf32, #tpu.memory_space<vmem>>, vector<14x128xf32>
    %cst_16 = arith.constant dense<0.000000e+00> : vector<16x128xf32>
    %27 = tpu.matmul %25, %26, %cst_16 {dimension_numbers = #tpu.dot_dimension_numbers<[1], [0], [0], [1], [0, 0, 1, 1], [], []>} : vector<16x14xf32>, vector<14x128xf32>, vector<16x128xf32> -> vector<16x128xf32>
    %c0_17 = arith.constant 0 : index
    %c0_18 = arith.constant 0 : index
    %28 = vector.load %arg6[%c0_17, %c0_18] : memref<1x128xf32, #tpu.memory_space<vmem>>, vector<1x128xf32>
    %29 = vector.broadcast %28 : vector<1x128xf32> to vector<16x128xf32>
    %30 = arith.addf %27, %29 : vector<16x128xf32>
    %31 = vector.shape_cast %30 : vector<16x128xf32> to vector<2x8x128xf32>
    %c0_19 = arith.constant 0 : index
    %c0_20 = arith.constant 0 : index
    %32 = vector.load %arg5[%c0_19, %c0_20] : memref<14x128xf32, #tpu.memory_space<vmem>>, vector<14x128xf32>
    %cst_21 = arith.constant dense<0.000000e+00> : vector<16x128xf32>
    %33 = tpu.matmul %25, %32, %cst_21 {dimension_numbers = #tpu.dot_dimension_numbers<[1], [0], [0], [1], [0, 0, 1, 1], [], []>} : vector<16x14xf32>, vector<14x128xf32>, vector<16x128xf32> -> vector<16x128xf32>
    %34 = vector.shape_cast %33 : vector<16x128xf32> to vector<2x8x128xf32>
    %c0_22 = arith.constant 0 : index
    %c0_23 = arith.constant 0 : index
    %35 = vector.load %arg7[%c0_22, %c0_23] : memref<32x128xf32, #tpu.memory_space<vmem>>, vector<32x128xf32>
    %cst_24 = arith.constant 0.000000e+00 : f32
    %36 = vector.broadcast %cst_24 : f32 to vector<2x32xf32>
    %cst_25 = arith.constant 0.000000e+00 : f32
    %37 = vector.broadcast %cst_25 : f32 to vector<2x32xf32>
    %38 = vector.extract_strided_slice %31 {offsets = [0, 0, 0], sizes = [2, 1, 128], strides = [1, 1, 1]} : vector<2x8x128xf32> to vector<2x1x128xf32>
    %39 = vector.shape_cast %38 : vector<2x1x128xf32> to vector<2x128xf32>
    %40 = vector.extract_strided_slice %34 {offsets = [0, 7, 0], sizes = [2, 1, 128], strides = [1, 1, 1]} : vector<2x8x128xf32> to vector<2x1x128xf32>
    %41 = vector.shape_cast %40 : vector<2x1x128xf32> to vector<2x128xf32>
    %42 = arith.addf %39, %41 : vector<2x128xf32>
    %cst_26 = arith.constant dense<0.000000e+00> : vector<2x128xf32>
    %43 = tpu.matmul %36, %35, %cst_26 {dimension_numbers = #tpu.dot_dimension_numbers<[1], [0], [0], [1], [0, 0, 1, 1], [], []>} : vector<2x32xf32>, vector<32x128xf32>, vector<2x128xf32> -> vector<2x128xf32>
    %44 = arith.addf %42, %43 : vector<2x128xf32>
    %45 = vector.extract_strided_slice %44 {offsets = [0, 0], sizes = [2, 96], strides = [1, 1]} : vector<2x128xf32> to vector<2x96xf32>
    %46 = arith.negf %45 : vector<2x96xf32>
    %47 = math.exp %46 : vector<2x96xf32>
    %cst_27 = arith.constant 1.000000e+00 : f32
    %48 = vector.broadcast %cst_27 : f32 to vector<2x96xf32>
    %49 = arith.addf %48, %47 : vector<2x96xf32>
    %50 = arith.divf %48, %49 : vector<2x96xf32>
    %51 = vector.extract_strided_slice %44 {offsets = [0, 96], sizes = [2, 32], strides = [1, 1]} : vector<2x128xf32> to vector<2x32xf32>
    %52 = math.tanh %51 : vector<2x32xf32>
    %53 = vector.extract_strided_slice %50 {offsets = [0, 0], sizes = [2, 32], strides = [1, 1]} : vector<2x96xf32> to vector<2x32xf32>
    %54 = vector.extract_strided_slice %50 {offsets = [0, 32], sizes = [2, 32], strides = [1, 1]} : vector<2x96xf32> to vector<2x32xf32>
    %55 = vector.extract_strided_slice %50 {offsets = [0, 64], sizes = [2, 32], strides = [1, 1]} : vector<2x96xf32> to vector<2x32xf32>
    %56 = arith.mulf %54, %37 : vector<2x32xf32>
    %57 = arith.mulf %53, %52 : vector<2x32xf32>
    %58 = arith.addf %56, %57 : vector<2x32xf32>
    %59 = math.tanh %58 : vector<2x32xf32>
    %60 = arith.mulf %55, %59 : vector<2x32xf32>
    %61 = vector.extract_strided_slice %60 {offsets = [0, 0], sizes = [2, 16], strides = [1, 1]} : vector<2x32xf32> to vector<2x16xf32>
    %c0_28 = arith.constant 0 : index
    %c0_29 = arith.constant 0 : index
    %c0_30 = arith.constant 0 : index
    %62 = vector.load %arg11[%c0_28, %c0_29, %c0_30] : memref<2x8x32xf32, #tpu.memory_space<vmem>>, vector<2x1x16xf32>
    %63 = vector.shape_cast %62 : vector<2x1x16xf32> to vector<2x16xf32>
    %64 = vector.shape_cast %61 : vector<2x16xf32> to vector<2x1x16xf32>
    tpu.vector_store %arg11[%c0_28, %c0_29, %c0_30], %64 {strides = array<i32>} : memref<2x8x32xf32, #tpu.memory_space<vmem>>, vector<2x1x16xf32>,
    %65 = vector.extract_strided_slice %60 {offsets = [0, 16], sizes = [2, 16], strides = [1, 1]} : vector<2x32xf32> to vector<2x16xf32>
    %c0_31 = arith.constant 0 : index
    %c7 = arith.constant 7 : index
    %c16 = arith.constant 16 : index
    %66 = vector.load %arg11[%c0_31, %c7, %c16] : memref<2x8x32xf32, #tpu.memory_space<vmem>>, vector<2x1x16xf32>
    %67 = vector.shape_cast %66 : vector<2x1x16xf32> to vector<2x16xf32>
    %68 = vector.shape_cast %65 : vector<2x16xf32> to vector<2x1x16xf32>
    tpu.vector_store %arg11[%c0_31, %c7, %c16], %68 {strides = array<i32>} : memref<2x8x32xf32, #tpu.memory_space<vmem>>, vector<2x1x16xf32>,
    %69 = vector.extract_strided_slice %31 {offsets = [0, 1, 0], sizes = [2, 1, 128], strides = [1, 1, 1]} : vector<2x8x128xf32> to vector<2x1x128xf32>
    %70 = vector.shape_cast %69 : vector<2x1x128xf32> to vector<2x128xf32>
    %71 = vector.extract_strided_slice %34 {offsets = [0, 6, 0], sizes = [2, 1, 128], strides = [1, 1, 1]} : vector<2x8x128xf32> to vector<2x1x128xf32>
    %72 = vector.shape_cast %71 : vector<2x1x128xf32> to vector<2x128xf32>
    %73 = arith.addf %70, %72 : vector<2x128xf32>
    %cst_32 = arith.constant dense<0.000000e+00> : vector<2x128xf32>
    %74 = tpu.matmul %60, %35, %cst_32 {dimension_numbers = #tpu.dot_dimension_numbers<[1], [0], [0], [1], [0, 0, 1, 1], [], []>} : vector<2x32xf32>, vector<32x128xf32>, vector<2x128xf32> -> vector<2x128xf32>
    %75 = arith.addf %73, %74 : vector<2x128xf32>
    %76 = vector.extract_strided_slice %75 {offsets = [0, 0], sizes = [2, 96], strides = [1, 1]} : vector<2x128xf32> to vector<2x96xf32>
    %77 = arith.negf %76 : vector<2x96xf32>
    %78 = math.exp %77 : vector<2x96xf32>
    %cst_33 = arith.constant 1.000000e+00 : f32
    %79 = vector.broadcast %cst_33 : f32 to vector<2x96xf32>
    %80 = arith.addf %79, %78 : vector<2x96xf32>
    %81 = arith.divf %79, %80 : vector<2x96xf32>
    %82 = vector.extract_strided_slice %75 {offsets = [0, 96], sizes = [2, 32], strides = [1, 1]} : vector<2x128xf32> to vector<2x32xf32>
    %83 = math.tanh %82 : vector<2x32xf32>
    %84 = vector.extract_strided_slice %81 {offsets = [0, 0], sizes = [2, 32], strides = [1, 1]} : vector<2x96xf32> to vector<2x32xf32>
    %85 = vector.extract_strided_slice %81 {offsets = [0, 32], sizes = [2, 32], strides = [1, 1]} : vector<2x96xf32> to vector<2x32xf32>
    %86 = vector.extract_strided_slice %81 {offsets = [0, 64], sizes = [2, 32], strides = [1, 1]} : vector<2x96xf32> to vector<2x32xf32>
    %87 = arith.mulf %85, %58 : vector<2x32xf32>
    %88 = arith.mulf %84, %83 : vector<2x32xf32>
    %89 = arith.addf %87, %88 : vector<2x32xf32>
    %90 = math.tanh %89 : vector<2x32xf32>
    %91 = arith.mulf %86, %90 : vector<2x32xf32>
    %92 = vector.extract_strided_slice %91 {offsets = [0, 0], sizes = [2, 16], strides = [1, 1]} : vector<2x32xf32> to vector<2x16xf32>
    %c0_34 = arith.constant 0 : index
    %c1 = arith.constant 1 : index
    %c0_35 = arith.constant 0 : index
    %93 = vector.load %arg11[%c0_34, %c1, %c0_35] : memref<2x8x32xf32, #tpu.memory_space<vmem>>, vector<2x1x16xf32>
    %94 = vector.shape_cast %93 : vector<2x1x16xf32> to vector<2x16xf32>
    %95 = vector.shape_cast %92 : vector<2x16xf32> to vector<2x1x16xf32>
    tpu.vector_store %arg11[%c0_34, %c1, %c0_35], %95 {strides = array<i32>} : memref<2x8x32xf32, #tpu.memory_space<vmem>>, vector<2x1x16xf32>,
    %96 = vector.extract_strided_slice %91 {offsets = [0, 16], sizes = [2, 16], strides = [1, 1]} : vector<2x32xf32> to vector<2x16xf32>
    %c0_36 = arith.constant 0 : index
    %c6 = arith.constant 6 : index
    %c16_37 = arith.constant 16 : index
    %97 = vector.load %arg11[%c0_36, %c6, %c16_37] : memref<2x8x32xf32, #tpu.memory_space<vmem>>, vector<2x1x16xf32>
    %98 = vector.shape_cast %97 : vector<2x1x16xf32> to vector<2x16xf32>
    %99 = vector.shape_cast %96 : vector<2x16xf32> to vector<2x1x16xf32>
    tpu.vector_store %arg11[%c0_36, %c6, %c16_37], %99 {strides = array<i32>} : memref<2x8x32xf32, #tpu.memory_space<vmem>>, vector<2x1x16xf32>,
    %100 = vector.extract_strided_slice %31 {offsets = [0, 2, 0], sizes = [2, 1, 128], strides = [1, 1, 1]} : vector<2x8x128xf32> to vector<2x1x128xf32>
    %101 = vector.shape_cast %100 : vector<2x1x128xf32> to vector<2x128xf32>
    %102 = vector.extract_strided_slice %34 {offsets = [0, 5, 0], sizes = [2, 1, 128], strides = [1, 1, 1]} : vector<2x8x128xf32> to vector<2x1x128xf32>
    %103 = vector.shape_cast %102 : vector<2x1x128xf32> to vector<2x128xf32>
    %104 = arith.addf %101, %103 : vector<2x128xf32>
    %cst_38 = arith.constant dense<0.000000e+00> : vector<2x128xf32>
    %105 = tpu.matmul %91, %35, %cst_38 {dimension_numbers = #tpu.dot_dimension_numbers<[1], [0], [0], [1], [0, 0, 1, 1], [], []>} : vector<2x32xf32>, vector<32x128xf32>, vector<2x128xf32> -> vector<2x128xf32>
    %106 = arith.addf %104, %105 : vector<2x128xf32>
    %107 = vector.extract_strided_slice %106 {offsets = [0, 0], sizes = [2, 96], strides = [1, 1]} : vector<2x128xf32> to vector<2x96xf32>
    %108 = arith.negf %107 : vector<2x96xf32>
    %109 = math.exp %108 : vector<2x96xf32>
    %cst_39 = arith.constant 1.000000e+00 : f32
    %110 = vector.broadcast %cst_39 : f32 to vector<2x96xf32>
    %111 = arith.addf %110, %109 : vector<2x96xf32>
    %112 = arith.divf %110, %111 : vector<2x96xf32>
    %113 = vector.extract_strided_slice %106 {offsets = [0, 96], sizes = [2, 32], strides = [1, 1]} : vector<2x128xf32> to vector<2x32xf32>
    %114 = math.tanh %113 : vector<2x32xf32>
    %115 = vector.extract_strided_slice %112 {offsets = [0, 0], sizes = [2, 32], strides = [1, 1]} : vector<2x96xf32> to vector<2x32xf32>
    %116 = vector.extract_strided_slice %112 {offsets = [0, 32], sizes = [2, 32], strides = [1, 1]} : vector<2x96xf32> to vector<2x32xf32>
    %117 = vector.extract_strided_slice %112 {offsets = [0, 64], sizes = [2, 32], strides = [1, 1]} : vector<2x96xf32> to vector<2x32xf32>
    %118 = arith.mulf %116, %89 : vector<2x32xf32>
    %119 = arith.mulf %115, %114 : vector<2x32xf32>
    %120 = arith.addf %118, %119 : vector<2x32xf32>
    %121 = math.tanh %120 : vector<2x32xf32>
    %122 = arith.mulf %117, %121 : vector<2x32xf32>
    %123 = vector.extract_strided_slice %122 {offsets = [0, 0], sizes = [2, 16], strides = [1, 1]} : vector<2x32xf32> to vector<2x16xf32>
    %c0_40 = arith.constant 0 : index
    %c2 = arith.constant 2 : index
    %c0_41 = arith.constant 0 : index
    %124 = vector.load %arg11[%c0_40, %c2, %c0_41] : memref<2x8x32xf32, #tpu.memory_space<vmem>>, vector<2x1x16xf32>
    %125 = vector.shape_cast %124 : vector<2x1x16xf32> to vector<2x16xf32>
    %126 = vector.shape_cast %123 : vector<2x16xf32> to vector<2x1x16xf32>
    tpu.vector_store %arg11[%c0_40, %c2, %c0_41], %126 {strides = array<i32>} : memref<2x8x32xf32, #tpu.memory_space<vmem>>, vector<2x1x16xf32>,
    %127 = vector.extract_strided_slice %122 {offsets = [0, 16], sizes = [2, 16], strides = [1, 1]} : vector<2x32xf32> to vector<2x16xf32>
    %c0_42 = arith.constant 0 : index
    %c5 = arith.constant 5 : index
    %c16_43 = arith.constant 16 : index
    %128 = vector.load %arg11[%c0_42, %c5, %c16_43] : memref<2x8x32xf32, #tpu.memory_space<vmem>>, vector<2x1x16xf32>
    %129 = vector.shape_cast %128 : vector<2x1x16xf32> to vector<2x16xf32>
    %130 = vector.shape_cast %127 : vector<2x16xf32> to vector<2x1x16xf32>
    tpu.vector_store %arg11[%c0_42, %c5, %c16_43], %130 {strides = array<i32>} : memref<2x8x32xf32, #tpu.memory_space<vmem>>, vector<2x1x16xf32>,
    %131 = vector.extract_strided_slice %31 {offsets = [0, 3, 0], sizes = [2, 1, 128], strides = [1, 1, 1]} : vector<2x8x128xf32> to vector<2x1x128xf32>
    %132 = vector.shape_cast %131 : vector<2x1x128xf32> to vector<2x128xf32>
    %133 = vector.extract_strided_slice %34 {offsets = [0, 4, 0], sizes = [2, 1, 128], strides = [1, 1, 1]} : vector<2x8x128xf32> to vector<2x1x128xf32>
    %134 = vector.shape_cast %133 : vector<2x1x128xf32> to vector<2x128xf32>
    %135 = arith.addf %132, %134 : vector<2x128xf32>
    %cst_44 = arith.constant dense<0.000000e+00> : vector<2x128xf32>
    %136 = tpu.matmul %122, %35, %cst_44 {dimension_numbers = #tpu.dot_dimension_numbers<[1], [0], [0], [1], [0, 0, 1, 1], [], []>} : vector<2x32xf32>, vector<32x128xf32>, vector<2x128xf32> -> vector<2x128xf32>
    %137 = arith.addf %135, %136 : vector<2x128xf32>
    %138 = vector.extract_strided_slice %137 {offsets = [0, 0], sizes = [2, 96], strides = [1, 1]} : vector<2x128xf32> to vector<2x96xf32>
    %139 = arith.negf %138 : vector<2x96xf32>
    %140 = math.exp %139 : vector<2x96xf32>
    %cst_45 = arith.constant 1.000000e+00 : f32
    %141 = vector.broadcast %cst_45 : f32 to vector<2x96xf32>
    %142 = arith.addf %141, %140 : vector<2x96xf32>
    %143 = arith.divf %141, %142 : vector<2x96xf32>
    %144 = vector.extract_strided_slice %137 {offsets = [0, 96], sizes = [2, 32], strides = [1, 1]} : vector<2x128xf32> to vector<2x32xf32>
    %145 = math.tanh %144 : vector<2x32xf32>
    %146 = vector.extract_strided_slice %143 {offsets = [0, 0], sizes = [2, 32], strides = [1, 1]} : vector<2x96xf32> to vector<2x32xf32>
    %147 = vector.extract_strided_slice %143 {offsets = [0, 32], sizes = [2, 32], strides = [1, 1]} : vector<2x96xf32> to vector<2x32xf32>
    %148 = vector.extract_strided_slice %143 {offsets = [0, 64], sizes = [2, 32], strides = [1, 1]} : vector<2x96xf32> to vector<2x32xf32>
    %149 = arith.mulf %147, %120 : vector<2x32xf32>
    %150 = arith.mulf %146, %145 : vector<2x32xf32>
    %151 = arith.addf %149, %150 : vector<2x32xf32>
    %152 = math.tanh %151 : vector<2x32xf32>
    %153 = arith.mulf %148, %152 : vector<2x32xf32>
    %154 = vector.extract_strided_slice %153 {offsets = [0, 0], sizes = [2, 16], strides = [1, 1]} : vector<2x32xf32> to vector<2x16xf32>
    %c0_46 = arith.constant 0 : index
    %c3 = arith.constant 3 : index
    %c0_47 = arith.constant 0 : index
    %155 = vector.load %arg11[%c0_46, %c3, %c0_47] : memref<2x8x32xf32, #tpu.memory_space<vmem>>, vector<2x1x16xf32>
    %156 = vector.shape_cast %155 : vector<2x1x16xf32> to vector<2x16xf32>
    %157 = vector.shape_cast %154 : vector<2x16xf32> to vector<2x1x16xf32>
    tpu.vector_store %arg11[%c0_46, %c3, %c0_47], %157 {strides = array<i32>} : memref<2x8x32xf32, #tpu.memory_space<vmem>>, vector<2x1x16xf32>,
    %158 = vector.extract_strided_slice %153 {offsets = [0, 16], sizes = [2, 16], strides = [1, 1]} : vector<2x32xf32> to vector<2x16xf32>
    %c0_48 = arith.constant 0 : index
    %c4 = arith.constant 4 : index
    %c16_49 = arith.constant 16 : index
    %159 = vector.load %arg11[%c0_48, %c4, %c16_49] : memref<2x8x32xf32, #tpu.memory_space<vmem>>, vector<2x1x16xf32>
    %160 = vector.shape_cast %159 : vector<2x1x16xf32> to vector<2x16xf32>
    %161 = vector.shape_cast %158 : vector<2x16xf32> to vector<2x1x16xf32>
    tpu.vector_store %arg11[%c0_48, %c4, %c16_49], %161 {strides = array<i32>} : memref<2x8x32xf32, #tpu.memory_space<vmem>>, vector<2x1x16xf32>,
    %162 = vector.extract_strided_slice %31 {offsets = [0, 4, 0], sizes = [2, 1, 128], strides = [1, 1, 1]} : vector<2x8x128xf32> to vector<2x1x128xf32>
    %163 = vector.shape_cast %162 : vector<2x1x128xf32> to vector<2x128xf32>
    %164 = vector.extract_strided_slice %34 {offsets = [0, 3, 0], sizes = [2, 1, 128], strides = [1, 1, 1]} : vector<2x8x128xf32> to vector<2x1x128xf32>
    %165 = vector.shape_cast %164 : vector<2x1x128xf32> to vector<2x128xf32>
    %166 = arith.addf %163, %165 : vector<2x128xf32>
    %cst_50 = arith.constant dense<0.000000e+00> : vector<2x128xf32>
    %167 = tpu.matmul %153, %35, %cst_50 {dimension_numbers = #tpu.dot_dimension_numbers<[1], [0], [0], [1], [0, 0, 1, 1], [], []>} : vector<2x32xf32>, vector<32x128xf32>, vector<2x128xf32> -> vector<2x128xf32>
    %168 = arith.addf %166, %167 : vector<2x128xf32>
    %169 = vector.extract_strided_slice %168 {offsets = [0, 0], sizes = [2, 96], strides = [1, 1]} : vector<2x128xf32> to vector<2x96xf32>
    %170 = arith.negf %169 : vector<2x96xf32>
    %171 = math.exp %170 : vector<2x96xf32>
    %cst_51 = arith.constant 1.000000e+00 : f32
    %172 = vector.broadcast %cst_51 : f32 to vector<2x96xf32>
    %173 = arith.addf %172, %171 : vector<2x96xf32>
    %174 = arith.divf %172, %173 : vector<2x96xf32>
    %175 = vector.extract_strided_slice %168 {offsets = [0, 96], sizes = [2, 32], strides = [1, 1]} : vector<2x128xf32> to vector<2x32xf32>
    %176 = math.tanh %175 : vector<2x32xf32>
    %177 = vector.extract_strided_slice %174 {offsets = [0, 0], sizes = [2, 32], strides = [1, 1]} : vector<2x96xf32> to vector<2x32xf32>
    %178 = vector.extract_strided_slice %174 {offsets = [0, 32], sizes = [2, 32], strides = [1, 1]} : vector<2x96xf32> to vector<2x32xf32>
    %179 = vector.extract_strided_slice %174 {offsets = [0, 64], sizes = [2, 32], strides = [1, 1]} : vector<2x96xf32> to vector<2x32xf32>
    %180 = arith.mulf %178, %151 : vector<2x32xf32>
    %181 = arith.mulf %177, %176 : vector<2x32xf32>
    %182 = arith.addf %180, %181 : vector<2x32xf32>
    %183 = math.tanh %182 : vector<2x32xf32>
    %184 = arith.mulf %179, %183 : vector<2x32xf32>
    %185 = vector.extract_strided_slice %184 {offsets = [0, 0], sizes = [2, 16], strides = [1, 1]} : vector<2x32xf32> to vector<2x16xf32>
    %c0_52 = arith.constant 0 : index
    %c4_53 = arith.constant 4 : index
    %c0_54 = arith.constant 0 : index
    %186 = vector.load %arg11[%c0_52, %c4_53, %c0_54] : memref<2x8x32xf32, #tpu.memory_space<vmem>>, vector<2x1x16xf32>
    %187 = vector.shape_cast %186 : vector<2x1x16xf32> to vector<2x16xf32>
    %188 = vector.shape_cast %185 : vector<2x16xf32> to vector<2x1x16xf32>
    tpu.vector_store %arg11[%c0_52, %c4_53, %c0_54], %188 {strides = array<i32>} : memref<2x8x32xf32, #tpu.memory_space<vmem>>, vector<2x1x16xf32>,
    %189 = vector.extract_strided_slice %184 {offsets = [0, 16], sizes = [2, 16], strides = [1, 1]} : vector<2x32xf32> to vector<2x16xf32>
    %c0_55 = arith.constant 0 : index
    %c3_56 = arith.constant 3 : index
    %c16_57 = arith.constant 16 : index
    %190 = vector.load %arg11[%c0_55, %c3_56, %c16_57] : memref<2x8x32xf32, #tpu.memory_space<vmem>>, vector<2x1x16xf32>
    %191 = vector.shape_cast %190 : vector<2x1x16xf32> to vector<2x16xf32>
    %192 = vector.shape_cast %189 : vector<2x16xf32> to vector<2x1x16xf32>
    tpu.vector_store %arg11[%c0_55, %c3_56, %c16_57], %192 {strides = array<i32>} : memref<2x8x32xf32, #tpu.memory_space<vmem>>, vector<2x1x16xf32>,
    %193 = vector.extract_strided_slice %31 {offsets = [0, 5, 0], sizes = [2, 1, 128], strides = [1, 1, 1]} : vector<2x8x128xf32> to vector<2x1x128xf32>
    %194 = vector.shape_cast %193 : vector<2x1x128xf32> to vector<2x128xf32>
    %195 = vector.extract_strided_slice %34 {offsets = [0, 2, 0], sizes = [2, 1, 128], strides = [1, 1, 1]} : vector<2x8x128xf32> to vector<2x1x128xf32>
    %196 = vector.shape_cast %195 : vector<2x1x128xf32> to vector<2x128xf32>
    %197 = arith.addf %194, %196 : vector<2x128xf32>
    %cst_58 = arith.constant dense<0.000000e+00> : vector<2x128xf32>
    %198 = tpu.matmul %184, %35, %cst_58 {dimension_numbers = #tpu.dot_dimension_numbers<[1], [0], [0], [1], [0, 0, 1, 1], [], []>} : vector<2x32xf32>, vector<32x128xf32>, vector<2x128xf32> -> vector<2x128xf32>
    %199 = arith.addf %197, %198 : vector<2x128xf32>
    %200 = vector.extract_strided_slice %199 {offsets = [0, 0], sizes = [2, 96], strides = [1, 1]} : vector<2x128xf32> to vector<2x96xf32>
    %201 = arith.negf %200 : vector<2x96xf32>
    %202 = math.exp %201 : vector<2x96xf32>
    %cst_59 = arith.constant 1.000000e+00 : f32
    %203 = vector.broadcast %cst_59 : f32 to vector<2x96xf32>
    %204 = arith.addf %203, %202 : vector<2x96xf32>
    %205 = arith.divf %203, %204 : vector<2x96xf32>
    %206 = vector.extract_strided_slice %199 {offsets = [0, 96], sizes = [2, 32], strides = [1, 1]} : vector<2x128xf32> to vector<2x32xf32>
    %207 = math.tanh %206 : vector<2x32xf32>
    %208 = vector.extract_strided_slice %205 {offsets = [0, 0], sizes = [2, 32], strides = [1, 1]} : vector<2x96xf32> to vector<2x32xf32>
    %209 = vector.extract_strided_slice %205 {offsets = [0, 32], sizes = [2, 32], strides = [1, 1]} : vector<2x96xf32> to vector<2x32xf32>
    %210 = vector.extract_strided_slice %205 {offsets = [0, 64], sizes = [2, 32], strides = [1, 1]} : vector<2x96xf32> to vector<2x32xf32>
    %211 = arith.mulf %209, %182 : vector<2x32xf32>
    %212 = arith.mulf %208, %207 : vector<2x32xf32>
    %213 = arith.addf %211, %212 : vector<2x32xf32>
    %214 = math.tanh %213 : vector<2x32xf32>
    %215 = arith.mulf %210, %214 : vector<2x32xf32>
    %216 = vector.extract_strided_slice %215 {offsets = [0, 0], sizes = [2, 16], strides = [1, 1]} : vector<2x32xf32> to vector<2x16xf32>
    %c0_60 = arith.constant 0 : index
    %c5_61 = arith.constant 5 : index
    %c0_62 = arith.constant 0 : index
    %217 = vector.load %arg11[%c0_60, %c5_61, %c0_62] : memref<2x8x32xf32, #tpu.memory_space<vmem>>, vector<2x1x16xf32>
    %218 = vector.shape_cast %217 : vector<2x1x16xf32> to vector<2x16xf32>
    %219 = vector.shape_cast %216 : vector<2x16xf32> to vector<2x1x16xf32>
    tpu.vector_store %arg11[%c0_60, %c5_61, %c0_62], %219 {strides = array<i32>} : memref<2x8x32xf32, #tpu.memory_space<vmem>>, vector<2x1x16xf32>,
    %220 = vector.extract_strided_slice %215 {offsets = [0, 16], sizes = [2, 16], strides = [1, 1]} : vector<2x32xf32> to vector<2x16xf32>
    %c0_63 = arith.constant 0 : index
    %c2_64 = arith.constant 2 : index
    %c16_65 = arith.constant 16 : index
    %221 = vector.load %arg11[%c0_63, %c2_64, %c16_65] : memref<2x8x32xf32, #tpu.memory_space<vmem>>, vector<2x1x16xf32>
    %222 = vector.shape_cast %221 : vector<2x1x16xf32> to vector<2x16xf32>
    %223 = vector.shape_cast %220 : vector<2x16xf32> to vector<2x1x16xf32>
    tpu.vector_store %arg11[%c0_63, %c2_64, %c16_65], %223 {strides = array<i32>} : memref<2x8x32xf32, #tpu.memory_space<vmem>>, vector<2x1x16xf32>,
    %224 = vector.extract_strided_slice %31 {offsets = [0, 6, 0], sizes = [2, 1, 128], strides = [1, 1, 1]} : vector<2x8x128xf32> to vector<2x1x128xf32>
    %225 = vector.shape_cast %224 : vector<2x1x128xf32> to vector<2x128xf32>
    %226 = vector.extract_strided_slice %34 {offsets = [0, 1, 0], sizes = [2, 1, 128], strides = [1, 1, 1]} : vector<2x8x128xf32> to vector<2x1x128xf32>
    %227 = vector.shape_cast %226 : vector<2x1x128xf32> to vector<2x128xf32>
    %228 = arith.addf %225, %227 : vector<2x128xf32>
    %cst_66 = arith.constant dense<0.000000e+00> : vector<2x128xf32>
    %229 = tpu.matmul %215, %35, %cst_66 {dimension_numbers = #tpu.dot_dimension_numbers<[1], [0], [0], [1], [0, 0, 1, 1], [], []>} : vector<2x32xf32>, vector<32x128xf32>, vector<2x128xf32> -> vector<2x128xf32>
    %230 = arith.addf %228, %229 : vector<2x128xf32>
    %231 = vector.extract_strided_slice %230 {offsets = [0, 0], sizes = [2, 96], strides = [1, 1]} : vector<2x128xf32> to vector<2x96xf32>
    %232 = arith.negf %231 : vector<2x96xf32>
    %233 = math.exp %232 : vector<2x96xf32>
    %cst_67 = arith.constant 1.000000e+00 : f32
    %234 = vector.broadcast %cst_67 : f32 to vector<2x96xf32>
    %235 = arith.addf %234, %233 : vector<2x96xf32>
    %236 = arith.divf %234, %235 : vector<2x96xf32>
    %237 = vector.extract_strided_slice %230 {offsets = [0, 96], sizes = [2, 32], strides = [1, 1]} : vector<2x128xf32> to vector<2x32xf32>
    %238 = math.tanh %237 : vector<2x32xf32>
    %239 = vector.extract_strided_slice %236 {offsets = [0, 0], sizes = [2, 32], strides = [1, 1]} : vector<2x96xf32> to vector<2x32xf32>
    %240 = vector.extract_strided_slice %236 {offsets = [0, 32], sizes = [2, 32], strides = [1, 1]} : vector<2x96xf32> to vector<2x32xf32>
    %241 = vector.extract_strided_slice %236 {offsets = [0, 64], sizes = [2, 32], strides = [1, 1]} : vector<2x96xf32> to vector<2x32xf32>
    %242 = arith.mulf %240, %213 : vector<2x32xf32>
    %243 = arith.mulf %239, %238 : vector<2x32xf32>
    %244 = arith.addf %242, %243 : vector<2x32xf32>
    %245 = math.tanh %244 : vector<2x32xf32>
    %246 = arith.mulf %241, %245 : vector<2x32xf32>
    %247 = vector.extract_strided_slice %246 {offsets = [0, 0], sizes = [2, 16], strides = [1, 1]} : vector<2x32xf32> to vector<2x16xf32>
    %c0_68 = arith.constant 0 : index
    %c6_69 = arith.constant 6 : index
    %c0_70 = arith.constant 0 : index
    %248 = vector.load %arg11[%c0_68, %c6_69, %c0_70] : memref<2x8x32xf32, #tpu.memory_space<vmem>>, vector<2x1x16xf32>
    %249 = vector.shape_cast %248 : vector<2x1x16xf32> to vector<2x16xf32>
    %250 = vector.shape_cast %247 : vector<2x16xf32> to vector<2x1x16xf32>
    tpu.vector_store %arg11[%c0_68, %c6_69, %c0_70], %250 {strides = array<i32>} : memref<2x8x32xf32, #tpu.memory_space<vmem>>, vector<2x1x16xf32>,
    %251 = vector.extract_strided_slice %246 {offsets = [0, 16], sizes = [2, 16], strides = [1, 1]} : vector<2x32xf32> to vector<2x16xf32>
    %c0_71 = arith.constant 0 : index
    %c1_72 = arith.constant 1 : index
    %c16_73 = arith.constant 16 : index
    %252 = vector.load %arg11[%c0_71, %c1_72, %c16_73] : memref<2x8x32xf32, #tpu.memory_space<vmem>>, vector<2x1x16xf32>
    %253 = vector.shape_cast %252 : vector<2x1x16xf32> to vector<2x16xf32>
    %254 = vector.shape_cast %251 : vector<2x16xf32> to vector<2x1x16xf32>
    tpu.vector_store %arg11[%c0_71, %c1_72, %c16_73], %254 {strides = array<i32>} : memref<2x8x32xf32, #tpu.memory_space<vmem>>, vector<2x1x16xf32>,
    %255 = vector.extract_strided_slice %31 {offsets = [0, 7, 0], sizes = [2, 1, 128], strides = [1, 1, 1]} : vector<2x8x128xf32> to vector<2x1x128xf32>
    %256 = vector.shape_cast %255 : vector<2x1x128xf32> to vector<2x128xf32>
    %257 = vector.extract_strided_slice %34 {offsets = [0, 0, 0], sizes = [2, 1, 128], strides = [1, 1, 1]} : vector<2x8x128xf32> to vector<2x1x128xf32>
    %258 = vector.shape_cast %257 : vector<2x1x128xf32> to vector<2x128xf32>
    %259 = arith.addf %256, %258 : vector<2x128xf32>
    %cst_74 = arith.constant dense<0.000000e+00> : vector<2x128xf32>
    %260 = tpu.matmul %246, %35, %cst_74 {dimension_numbers = #tpu.dot_dimension_numbers<[1], [0], [0], [1], [0, 0, 1, 1], [], []>} : vector<2x32xf32>, vector<32x128xf32>, vector<2x128xf32> -> vector<2x128xf32>
    %261 = arith.addf %259, %260 : vector<2x128xf32>
    %262 = vector.extract_strided_slice %261 {offsets = [0, 0], sizes = [2, 96], strides = [1, 1]} : vector<2x128xf32> to vector<2x96xf32>
    %263 = arith.negf %262 : vector<2x96xf32>
    %264 = math.exp %263 : vector<2x96xf32>
    %cst_75 = arith.constant 1.000000e+00 : f32
    %265 = vector.broadcast %cst_75 : f32 to vector<2x96xf32>
    %266 = arith.addf %265, %264 : vector<2x96xf32>
    %267 = arith.divf %265, %266 : vector<2x96xf32>
    %268 = vector.extract_strided_slice %261 {offsets = [0, 96], sizes = [2, 32], strides = [1, 1]} : vector<2x128xf32> to vector<2x32xf32>
    %269 = math.tanh %268 : vector<2x32xf32>
    %270 = vector.extract_strided_slice %267 {offsets = [0, 0], sizes = [2, 32], strides = [1, 1]} : vector<2x96xf32> to vector<2x32xf32>
    %271 = vector.extract_strided_slice %267 {offsets = [0, 32], sizes = [2, 32], strides = [1, 1]} : vector<2x96xf32> to vector<2x32xf32>
    %272 = vector.extract_strided_slice %267 {offsets = [0, 64], sizes = [2, 32], strides = [1, 1]} : vector<2x96xf32> to vector<2x32xf32>
    %273 = arith.mulf %271, %244 : vector<2x32xf32>
    %274 = arith.mulf %270, %269 : vector<2x32xf32>
    %275 = arith.addf %273, %274 : vector<2x32xf32>
    %276 = math.tanh %275 : vector<2x32xf32>
    %277 = arith.mulf %272, %276 : vector<2x32xf32>
    %278 = vector.extract_strided_slice %277 {offsets = [0, 0], sizes = [2, 16], strides = [1, 1]} : vector<2x32xf32> to vector<2x16xf32>
    %c0_76 = arith.constant 0 : index
    %c7_77 = arith.constant 7 : index
    %c0_78 = arith.constant 0 : index
    %279 = vector.load %arg11[%c0_76, %c7_77, %c0_78] : memref<2x8x32xf32, #tpu.memory_space<vmem>>, vector<2x1x16xf32>
    %280 = vector.shape_cast %279 : vector<2x1x16xf32> to vector<2x16xf32>
    %281 = vector.shape_cast %278 : vector<2x16xf32> to vector<2x1x16xf32>
    tpu.vector_store %arg11[%c0_76, %c7_77, %c0_78], %281 {strides = array<i32>} : memref<2x8x32xf32, #tpu.memory_space<vmem>>, vector<2x1x16xf32>,
    %282 = vector.extract_strided_slice %277 {offsets = [0, 16], sizes = [2, 16], strides = [1, 1]} : vector<2x32xf32> to vector<2x16xf32>
    %c0_79 = arith.constant 0 : index
    %c0_80 = arith.constant 0 : index
    %c16_81 = arith.constant 16 : index
    %283 = vector.load %arg11[%c0_79, %c0_80, %c16_81] : memref<2x8x32xf32, #tpu.memory_space<vmem>>, vector<2x1x16xf32>
    %284 = vector.shape_cast %283 : vector<2x1x16xf32> to vector<2x16xf32>
    %285 = vector.shape_cast %282 : vector<2x16xf32> to vector<2x1x16xf32>
    tpu.vector_store %arg11[%c0_79, %c0_80, %c16_81], %285 {strides = array<i32>} : memref<2x8x32xf32, #tpu.memory_space<vmem>>, vector<2x1x16xf32>,
    %c0_82 = arith.constant 0 : index
    %c0_83 = arith.constant 0 : index
    %c0_84 = arith.constant 0 : index
    %286 = vector.load %arg11[%c0_82, %c0_83, %c0_84] : memref<2x8x32xf32, #tpu.memory_space<vmem>>, vector<2x8x32xf32>
    %287 = vector.shape_cast %286 : vector<2x8x32xf32> to vector<16x32xf32>
    %c0_85 = arith.constant 0 : index
    %c0_86 = arith.constant 0 : index
    %288 = vector.load %arg8[%c0_85, %c0_86] : memref<32x4xf32, #tpu.memory_space<vmem>>, vector<32x4xf32>
    %cst_87 = arith.constant dense<0.000000e+00> : vector<16x4xf32>
    %289 = tpu.matmul %287, %288, %cst_87 {dimension_numbers = #tpu.dot_dimension_numbers<[1], [0], [0], [1], [0, 0, 1, 1], [], []>} : vector<16x32xf32>, vector<32x4xf32>, vector<16x4xf32> -> vector<16x4xf32>
    %c0_88 = arith.constant 0 : index
    %c0_89 = arith.constant 0 : index
    %290 = vector.load %arg9[%c0_88, %c0_89] : memref<1x4xf32, #tpu.memory_space<vmem>>, vector<1x4xf32>
    %291 = vector.broadcast %290 : vector<1x4xf32> to vector<16x4xf32>
    %292 = arith.addf %289, %291 : vector<16x4xf32>
    %293 = vector.shape_cast %292 : vector<16x4xf32> to vector<2x8x4xf32>
    %c0_90 = arith.constant 0 : index
    %c0_91 = arith.constant 0 : index
    %c0_92 = arith.constant 0 : index
    %294 = vector.load %arg10[%c0_90, %c0_91, %c0_92] : memref<2x8x4xf32, #tpu.memory_space<vmem>>, vector<2x8x4xf32>
    tpu.vector_store %arg10[%c0_90, %c0_91, %c0_92], %293 {strides = array<i32>} : memref<2x8x4xf32, #tpu.memory_space<vmem>>, vector<2x8x4xf32>,
    return
  }
}

</mosaic_0001>

<llo_original>
// kernel: forward.1
$region0: #{forward.1}
  #allocation0 [shape = 'u32[]', space=smem, size = 0x4, offset = 0x4, fixed_abs, tag = 'smem constant byte address 0x4 - core index']
  #allocation1 [shape = 'u32[144,128]{1,0:T(1,128)}', space=vmem, size = 0x12000, scoped, tag = 'internal scratch']
  #allocation2 [shape = 'f32[2,8,32]{2,1,0:T(8,128)}', space=vmem, size = 0x2000, scoped, tag = 'scratch operand']
  %s0 = inlined_call_operand.vmem [shape: f32[2,16,32], index: 0, kind: input, shape index: {}]
  %s1 = inlined_call_operand.vmem [shape: f32[2,16,32], index: 1, kind: input, shape index: {}]
  %s2 = inlined_call_operand.vmem [shape: f32[8,96], index: 2, kind: input, shape index: {}]
  %s3 = inlined_call_operand.vmem [shape: f32[8,14], index: 3, kind: input, shape index: {}]
  %s4 = inlined_call_operand.vmem [shape: f32[14,128], index: 4, kind: input, shape index: {}]
  %s5 = inlined_call_operand.vmem [shape: f32[14,128], index: 5, kind: input, shape index: {}]
  %s6 = inlined_call_operand.vmem [shape: f32[1,128], index: 6, kind: input, shape index: {}]
  %s7 = inlined_call_operand.vmem [shape: f32[32,128], index: 7, kind: input, shape index: {}]
  %s8 = inlined_call_operand.vmem [shape: f32[32,4], index: 8, kind: input, shape index: {}]
  %s9 = inlined_call_operand.vmem [shape: f32[1,4], index: 9, kind: input, shape index: {}]
  %s10 = inlined_call_operand.vmem [shape: f32[2,8,4], index: 10, kind: output, shape index: {}]
  %s11 = sld [smem:[#allocation0]]
  $region50: #{forward.1} parent=0
    _
  %s13 = ssub.s32 1, %s11
  %s14 = scalar_select 0, %s13, %s11
  // Predicated region
  $region2: #{forward.1} parent=0 // pred_check
    _
  $region3: #{forward.1} parent=0 // pred_check_branch
    %16 = sbr.rel (0) target = $region5
  $region4: #{forward.1} parent=0 // pred_region
    _
  $region5: #{forward.1} parent=0 // pred_fallthru
    _
  // Predicated region
  $region6: #{forward.1} parent=0 // pred_check
    _
  $region7: #{forward.1} parent=0 // pred_check_branch
    %18 = sbr.rel (0) target = $region9
  $region8: #{forward.1} parent=0 // pred_region
    _
  $region9: #{forward.1} parent=0 // pred_fallthru
    _
  // Predicated region
  $region10: #{forward.1} parent=0 // pred_check
    _
  $region11: #{forward.1} parent=0 // pred_check_branch
    %20 = sbr.rel (0) target = $region13
  $region12: #{forward.1} parent=0 // pred_region
    _
  $region13: #{forward.1} parent=0 // pred_fallthru
    _
  // Predicated region
  $region14: #{forward.1} parent=0 // pred_check
    _
  $region15: #{forward.1} parent=0 // pred_check_branch
    %22 = sbr.rel (0) target = $region17
  $region16: #{forward.1} parent=0 // pred_region
    _
  $region17: #{forward.1} parent=0 // pred_fallthru
    _
  // Predicated region
  $region18: #{forward.1} parent=0 // pred_check
    _
  $region19: #{forward.1} parent=0 // pred_check_branch
    %24 = sbr.rel (0) target = $region21
  $region20: #{forward.1} parent=0 // pred_region
    _
  $region21: #{forward.1} parent=0 // pred_fallthru
    _
  // Predicated region
  $region22: #{forward.1} parent=0 // pred_check
    _
  $region23: #{forward.1} parent=0 // pred_check_branch
    %26 = sbr.rel (0) target = $region25
  $region24: #{forward.1} parent=0 // pred_region
    _
  $region25: #{forward.1} parent=0 // pred_fallthru
    _
  // Predicated region
  $region26: #{forward.1} parent=0 // pred_check
    _
  $region27: #{forward.1} parent=0 // pred_check_branch
    %28 = sbr.rel (0) target = $region29
  $region28: #{forward.1} parent=0 // pred_region
    _
  $region29: #{forward.1} parent=0 // pred_fallthru
    _
  // Predicated region
  $region30: #{forward.1} parent=0 // pred_check
    _
  $region31: #{forward.1} parent=0 // pred_check_branch
    %30 = sbr.rel (0) target = $region33
  $region32: #{forward.1} parent=0 // pred_region
    _
  $region33: #{forward.1} parent=0 // pred_fallthru
    _
  // Predicated region
  $region34: #{forward.1} parent=0 // pred_check
    _
  $region35: #{forward.1} parent=0 // pred_check_branch
    %32 = sbr.rel (0) target = $region37
  $region36: #{forward.1} parent=0 // pred_region
    _
  $region37: #{forward.1} parent=0 // pred_fallthru
    _
  // Predicated region
  $region38: #{forward.1} parent=0 // pred_check
    _
  $region39: #{forward.1} parent=0 // pred_check_branch
    %34 = sbr.rel (0) target = $region41
  $region40: #{forward.1} parent=0 // pred_region
    _
  $region41: #{forward.1} parent=0 // pred_fallthru
    _
  %v35 = vld [vmem:[%s0] sm:$0xff]
  %v36 = vld [vmem:[%s0 + $0x8] sm:$0xff]
  %v37 = vld [vmem:[%s0 + $0x10] sm:$0xff]
  %v38 = vld [vmem:[%s0 + $0x18] sm:$0xff]
  %v39 = vld [vmem:[%s1] sm:$0xff]
  %v40 = vld [vmem:[%s1 + $0x8] sm:$0xff]
  %v41 = vld [vmem:[%s1 + $0x10] sm:$0xff]
  %v42 = vld [vmem:[%s1 + $0x18] sm:$0xff]
  %v43 = vmul.f32 %v35, %v39
  %v44 = vmul.f32 %v36, %v40
  %v45 = vmul.f32 %v37, %v41
  %v46 = vmul.f32 %v38, %v42
  %vm49 = vcmask 1046528
  %v50 = vrot.slane %v43, 1
  %v51 = vrot.slane %v44, 1
  %v52 = vsel %vm49, %v50, %v51
  %53 = vrot.lane.b32.xlu0 %v52, 32
  %v54 = vpop.permute.xlu0 %53
  %55 = vrot.lane.b32.xlu0 %v51, 32
  %v56 = vpop.permute.xlu0 %55
  %vm59 = vcmask 1045504
  %v60 = vrot.slane %v43, 2
  %v61 = vrot.slane %v44, 2
  %v62 = vsel %vm59, %v60, %v61
  %63 = vrot.lane.b32.xlu0 %v62, 64
  %v64 = vpop.permute.xlu0 %63
  %65 = vrot.lane.b32.xlu0 %v61, 64
  %v66 = vpop.permute.xlu0 %65
  %vm69 = vcmask 261120
  %v70 = vsel %vm69, %v43, %v54
  %v71 = vsel %vm69, %v44, %v56
  %vm72 = vcmask 523264
  %v73 = vsel %vm72, %v70, %v64
  %v74 = vsel %vm72, %v71, %v66
  %v75 = vld [vmem:[%s2] sm:$0xff]
  %v76 = vld [vmem:[%s3] sm:$0xff]
  %vm77 = vcmask 785408
  %v79 = vsel %vm77, %v75, 0
  %v82 = vsel %vm77, %v73, 0
  %v85 = vsel %vm77, %v74, 0
  %87 = vmatprep.subr.mxu0 0.0
  %88 = vmatpush1.xpose.msra.mxu0 %v82
  %89 = vmatprep.subr.mxu0 0.0
  %90 = vmatpush1.xpose.msra.mxu0 %v85
  %91 = vmatprep.subr.mxu0 0.0
  %92 = vmatpush1.xpose.msra.mxu0 0.0
  %93 = vmatprep.subr.mxu0 0.0
  %94 = vmatpush1.xpose.msra.mxu0 0.0
  %95 = vmatprep.subr.mxu0 0.0
  %96 = vmatpush1.xpose.msra.mxu0 0.0
  %97 = vmatprep.subr.mxu0 0.0
  %98 = vmatpush1.xpose.msra.mxu0 0.0
  %99 = vmatprep.subr.mxu0 0.0
  %100 = vmatpush1.xpose.msra.mxu0 0.0
  %101 = vmatprep.subr.mxu0 0.0
  %102 = vmatpush1.xpose.msra.mxu0 0.0
  %103 = vmatprep.subr.mxu0 0.0
  %104 = vmatpush1.xpose.msra.mxu0 0.0
  %105 = vmatprep.subr.mxu0 0.0
  %106 = vmatpush1.xpose.msra.mxu0 0.0
  %107 = vmatprep.subr.mxu0 0.0
  %108 = vmatpush1.xpose.msra.mxu0 0.0
  %109 = vmatprep.subr.mxu0 0.0
  %110 = vmatpush1.xpose.msra.mxu0 0.0
  %111 = vmatprep.subr.mxu0 0.0
  %112 = vmatpush1.xpose.msra.mxu0 0.0
  %113 = vmatprep.subr.mxu0 0.0
  %114 = vmatpush1.xpose.msra.mxu0 0.0
  %115 = vmatprep.subr.mxu0 0.0
  %116 = vmatpush1.xpose.msra.mxu0 0.0
  %117 = vmatprep.subr.mxu0 0.0
  %118 = vmatpush1.xpose.msra.mxu0 0.0
  %119 = vmatprep.subr.mxu0 0.0
  %120 = vmatpush1.xpose.msra.mxu0 0.0
  %121 = vmatprep.subr.mxu0 0.0
  %122 = vmatpush1.xpose.msra.mxu0 0.0
  %123 = vmatprep.subr.mxu0 0.0
  %124 = vmatpush1.xpose.msra.mxu0 0.0
  %125 = vmatprep.subr.mxu0 0.0
  %126 = vmatpush1.xpose.msra.mxu0 0.0
  %127 = vmatprep.subr.mxu0 0.0
  %128 = vmatpush1.xpose.msra.mxu0 0.0
  %129 = vmatprep.subr.mxu0 0.0
  %130 = vmatpush1.xpose.msra.mxu0 0.0
  %131 = vmatprep.subr.mxu0 0.0
  %132 = vmatpush1.xpose.msra.mxu0 0.0
  %133 = vmatprep.subr.mxu0 0.0
  %134 = vmatpush1.xpose.msra.mxu0 0.0
  %135 = vmatprep.subr.mxu0 0.0
  %136 = vmatpush1.xpose.msra.mxu0 0.0
  %137 = vmatprep.subr.mxu0 0.0
  %138 = vmatpush1.xpose.msra.mxu0 0.0
  %139 = vmatprep.subr.mxu0 0.0
  %140 = vmatpush1.xpose.msra.mxu0 0.0
  %141 = vmatprep.subr.mxu0 0.0
  %142 = vmatpush1.xpose.msra.mxu0 0.0
  %143 = vmatprep.subr.mxu0 0.0
  %144 = vmatpush1.xpose.msra.mxu0 0.0
  %145 = vmatprep.subr.mxu0 0.0
  %146 = vmatpush1.xpose.msra.mxu0 0.0
  %147 = vmatprep.subr.mxu0 0.0
  %148 = vmatpush1.xpose.msra.mxu0 0.0
  %149 = vmatprep.subr.mxu0 0.0
  %150 = vmatpush1.xpose.msra.mxu0 0.0
  %151 = vmatprep.mubr.f32.mxu0 0.0
  %152 = vmatmul.mubr.f32.gmra.mrb[0].mxu0 %v79
  %v153 = vpop.f32.mrb[0].mxu0
  %v154 = vadd.f32 %v76, %v153
  %v155 = vpop.f32.mrb[0].mxu0
  %156 = vdwg.mxu0
  %v159 = vrot.slane %v45, 1
  %v160 = vrot.slane %v46, 1
  %v161 = vsel %vm49, %v159, %v160
  %162 = vrot.lane.b32.xlu0 %v161, 32
  %v163 = vpop.permute.xlu0 %162
  %164 = vrot.lane.b32.xlu0 %v160, 32
  %v165 = vpop.permute.xlu0 %164
  %v168 = vrot.slane %v45, 2
  %v169 = vrot.slane %v46, 2
  %v170 = vsel %vm59, %v168, %v169
  %171 = vrot.lane.b32.xlu0 %v170, 64
  %v172 = vpop.permute.xlu0 %171
  %173 = vrot.lane.b32.xlu0 %v169, 64
  %v174 = vpop.permute.xlu0 %173
  %v177 = vsel %vm69, %v45, %v163
  %v178 = vsel %vm69, %v46, %v165
  %v179 = vsel %vm72, %v177, %v172
  %v180 = vsel %vm72, %v178, %v174
  %v182 = vsel %vm77, %v179, 0
  %v185 = vsel %vm77, %v180, 0
  %187 = vmatprep.subr.mxu0 0.0
  %188 = vmatpush1.xpose.msra.mxu0 %v182
  %189 = vmatprep.subr.mxu0 0.0
  %190 = vmatpush1.xpose.msra.mxu0 %v185
  %191 = vmatprep.subr.mxu0 0.0
  %192 = vmatpush1.xpose.msra.mxu0 0.0
  %193 = vmatprep.subr.mxu0 0.0
  %194 = vmatpush1.xpose.msra.mxu0 0.0
  %195 = vmatprep.subr.mxu0 0.0
  %196 = vmatpush1.xpose.msra.mxu0 0.0
  %197 = vmatprep.subr.mxu0 0.0
  %198 = vmatpush1.xpose.msra.mxu0 0.0
  %199 = vmatprep.subr.mxu0 0.0
  %200 = vmatpush1.xpose.msra.mxu0 0.0
  %201 = vmatprep.subr.mxu0 0.0
  %202 = vmatpush1.xpose.msra.mxu0 0.0
  %203 = vmatprep.subr.mxu0 0.0
  %204 = vmatpush1.xpose.msra.mxu0 0.0
  %205 = vmatprep.subr.mxu0 0.0
  %206 = vmatpush1.xpose.msra.mxu0 0.0
  %207 = vmatprep.subr.mxu0 0.0
  %208 = vmatpush1.xpose.msra.mxu0 0.0
  %209 = vmatprep.subr.mxu0 0.0
  %210 = vmatpush1.xpose.msra.mxu0 0.0
  %211 = vmatprep.subr.mxu0 0.0
  %212 = vmatpush1.xpose.msra.mxu0 0.0
  %213 = vmatprep.subr.mxu0 0.0
  %214 = vmatpush1.xpose.msra.mxu0 0.0
  %215 = vmatprep.subr.mxu0 0.0
  %216 = vmatpush1.xpose.msra.mxu0 0.0
  %217 = vmatprep.subr.mxu0 0.0
  %218 = vmatpush1.xpose.msra.mxu0 0.0
  %219 = vmatprep.subr.mxu0 0.0
  %220 = vmatpush1.xpose.msra.mxu0 0.0
  %221 = vmatprep.subr.mxu0 0.0
  %222 = vmatpush1.xpose.msra.mxu0 0.0
  %223 = vmatprep.subr.mxu0 0.0
  %224 = vmatpush1.xpose.msra.mxu0 0.0
  %225 = vmatprep.subr.mxu0 0.0
  %226 = vmatpush1.xpose.msra.mxu0 0.0
  %227 = vmatprep.subr.mxu0 0.0
  %228 = vmatpush1.xpose.msra.mxu0 0.0
  %229 = vmatprep.subr.mxu0 0.0
  %230 = vmatpush1.xpose.msra.mxu0 0.0
  %231 = vmatprep.subr.mxu0 0.0
  %232 = vmatpush1.xpose.msra.mxu0 0.0
  %233 = vmatprep.subr.mxu0 0.0
  %234 = vmatpush1.xpose.msra.mxu0 0.0
  %235 = vmatprep.subr.mxu0 0.0
  %236 = vmatpush1.xpose.msra.mxu0 0.0
  %237 = vmatprep.subr.mxu0 0.0
  %238 = vmatpush1.xpose.msra.mxu0 0.0
  %239 = vmatprep.subr.mxu0 0.0
  %240 = vmatpush1.xpose.msra.mxu0 0.0
  %241 = vmatprep.subr.mxu0 0.0
  %242 = vmatpush1.xpose.msra.mxu0 0.0
  %243 = vmatprep.subr.mxu0 0.0
  %244 = vmatpush1.xpose.msra.mxu0 0.0
  %245 = vmatprep.subr.mxu0 0.0
  %246 = vmatpush1.xpose.msra.mxu0 0.0
  %247 = vmatprep.subr.mxu0 0.0
  %248 = vmatpush1.xpose.msra.mxu0 0.0
  %249 = vmatprep.subr.mxu0 0.0
  %250 = vmatpush1.xpose.msra.mxu0 0.0
  %251 = vmatprep.mubr.f32.mxu0 0.0
  %252 = vmatmul.mubr.f32.gmra.mrb[0].mxu0 %v79
  %v253 = vpop.f32.mrb[0].mxu0
  %v254 = vadd.f32 %v76, %v253
  %v255 = vpop.f32.mrb[0].mxu0
  %256 = vdwg.mxu0
  %v257 = vld [vmem:[%s4] sm:$0xff]
  %v258 = vld [vmem:[%s4 + $0x8] sm:$0x3f]
  %v259 = vld [vmem:[%s6] sm:$0x1]
  %v261 = vlaneseq
  %v262 = vshrl.u32 %v261, 7
  %v263 = vsub.s32 0, %v262
  %v264 = vrot.slane %v259, %v263
  %vm266 = vcmask 113664
  %v268 = vsel %vm266, %v154, 0
  %v271 = vsel %vm266, %v254, 0
  %v274 = vsel %vm59, %v258, 0
  %276 = vmatprep.subr.mxu0 0.0
  %277 = vmatpush1.msra.mxu0 %v257
  %278 = vmatprep.subr.mxu0 0.0
  %279 = vmatpush1.msra.mxu0 %v274
  %280 = vmatprep.subr.mxu0 0.0
  %281 = vmatpush1.msra.mxu0 0.0
  %282 = vmatprep.subr.mxu0 0.0
  %283 = vmatpush1.msra.mxu0 0.0
  %284 = vmatprep.subr.mxu0 0.0
  %285 = vmatpush1.msra.mxu0 0.0
  %286 = vmatprep.subr.mxu0 0.0
  %287 = vmatpush1.msra.mxu0 0.0
  %288 = vmatprep.subr.mxu0 0.0
  %289 = vmatpush1.msra.mxu0 0.0
  %290 = vmatprep.subr.mxu0 0.0
  %291 = vmatpush1.msra.mxu0 0.0
  %292 = vmatprep.subr.mxu0 0.0
  %293 = vmatpush1.msra.mxu0 0.0
  %294 = vmatprep.subr.mxu0 0.0
  %295 = vmatpush1.msra.mxu0 0.0
  %296 = vmatprep.subr.mxu0 0.0
  %297 = vmatpush1.msra.mxu0 0.0
  %298 = vmatprep.subr.mxu0 0.0
  %299 = vmatpush1.msra.mxu0 0.0
  %300 = vmatprep.subr.mxu0 0.0
  %301 = vmatpush1.msra.mxu0 0.0
  %302 = vmatprep.subr.mxu0 0.0
  %303 = vmatpush1.msra.mxu0 0.0
  %304 = vmatprep.subr.mxu0 0.0
  %305 = vmatpush1.msra.mxu0 0.0
  %306 = vmatprep.subr.mxu0 0.0
  %307 = vmatpush1.msra.mxu0 0.0
  %308 = vmatprep.subr.mxu0 0.0
  %309 = vmatpush1.msra.mxu0 0.0
  %310 = vmatprep.subr.mxu0 0.0
  %311 = vmatpush1.msra.mxu0 0.0
  %312 = vmatprep.subr.mxu0 0.0
  %313 = vmatpush1.msra.mxu0 0.0
  %314 = vmatprep.subr.mxu0 0.0
  %315 = vmatpush1.msra.mxu0 0.0
  %316 = vmatprep.subr.mxu0 0.0
  %317 = vmatpush1.msra.mxu0 0.0
  %318 = vmatprep.subr.mxu0 0.0
  %319 = vmatpush1.msra.mxu0 0.0
  %320 = vmatprep.subr.mxu0 0.0
  %321 = vmatpush1.msra.mxu0 0.0
  %322 = vmatprep.subr.mxu0 0.0
  %323 = vmatpush1.msra.mxu0 0.0
  %324 = vmatprep.subr.mxu0 0.0
  %325 = vmatpush1.msra.mxu0 0.0
  %326 = vmatprep.subr.mxu0 0.0
  %327 = vmatpush1.msra.mxu0 0.0
  %328 = vmatprep.subr.mxu0 0.0
  %329 = vmatpush1.msra.mxu0 0.0
  %330 = vmatprep.subr.mxu0 0.0
  %331 = vmatpush1.msra.mxu0 0.0
  %332 = vmatprep.subr.mxu0 0.0
  %333 = vmatpush1.msra.mxu0 0.0
  %334 = vmatprep.subr.mxu0 0.0
  %335 = vmatpush1.msra.mxu0 0.0
  %336 = vmatprep.subr.mxu0 0.0
  %337 = vmatpush1.msra.mxu0 0.0
  %338 = vmatprep.subr.mxu0 0.0
  %339 = vmatpush1.msra.mxu0 0.0
  %340 = vmatprep.mubr.f32.mxu0 0.0
  %341 = vmatmul.mubr.f32.gmra.mrb[0].mxu0 %v268
  %v342 = vpop.f32.mrb[0].mxu0
  %v343 = vadd.f32 %v264, %v342
  %v344 = vpop.f32.mrb[0].mxu0
  %345 = vmatprep.mubr.f32.mxu0 0.0
  %346 = vmatmul.mubr.f32.gmra.mrb[0].mxu0 %v271
  %v347 = vpop.f32.mrb[0].mxu0
  %v348 = vadd.f32 %v264, %v347
  %v349 = vpop.f32.mrb[0].mxu0
  %350 = vdwg.mxu0
  %v351 = vld [vmem:[%s5] sm:$0xff]
  %v352 = vld [vmem:[%s5 + $0x8] sm:$0x3f]
  %v354 = vsel %vm59, %v352, 0
  %356 = vmatprep.subr.mxu0 0.0
  %357 = vmatpush1.msra.mxu0 %v351
  %358 = vmatprep.subr.mxu0 0.0
  %359 = vmatpush1.msra.mxu0 %v354
  %360 = vmatprep.subr.mxu0 0.0
  %361 = vmatpush1.msra.mxu0 0.0
  %362 = vmatprep.subr.mxu0 0.0
  %363 = vmatpush1.msra.mxu0 0.0
  %364 = vmatprep.subr.mxu0 0.0
  %365 = vmatpush1.msra.mxu0 0.0
  %366 = vmatprep.subr.mxu0 0.0
  %367 = vmatpush1.msra.mxu0 0.0
  %368 = vmatprep.subr.mxu0 0.0
  %369 = vmatpush1.msra.mxu0 0.0
  %370 = vmatprep.subr.mxu0 0.0
  %371 = vmatpush1.msra.mxu0 0.0
  %372 = vmatprep.subr.mxu0 0.0
  %373 = vmatpush1.msra.mxu0 0.0
  %374 = vmatprep.subr.mxu0 0.0
  %375 = vmatpush1.msra.mxu0 0.0
  %376 = vmatprep.subr.mxu0 0.0
  %377 = vmatpush1.msra.mxu0 0.0
  %378 = vmatprep.subr.mxu0 0.0
  %379 = vmatpush1.msra.mxu0 0.0
  %380 = vmatprep.subr.mxu0 0.0
  %381 = vmatpush1.msra.mxu0 0.0
  %382 = vmatprep.subr.mxu0 0.0
  %383 = vmatpush1.msra.mxu0 0.0
  %384 = vmatprep.subr.mxu0 0.0
  %385 = vmatpush1.msra.mxu0 0.0
  %386 = vmatprep.subr.mxu0 0.0
  %387 = vmatpush1.msra.mxu0 0.0
  %388 = vmatprep.subr.mxu0 0.0
  %389 = vmatpush1.msra.mxu0 0.0
  %390 = vmatprep.subr.mxu0 0.0
  %391 = vmatpush1.msra.mxu0 0.0
  %392 = vmatprep.subr.mxu0 0.0
  %393 = vmatpush1.msra.mxu0 0.0
  %394 = vmatprep.subr.mxu0 0.0
  %395 = vmatpush1.msra.mxu0 0.0
  %396 = vmatprep.subr.mxu0 0.0
  %397 = vmatpush1.msra.mxu0 0.0
  %398 = vmatprep.subr.mxu0 0.0
  %399 = vmatpush1.msra.mxu0 0.0
  %400 = vmatprep.subr.mxu0 0.0
  %401 = vmatpush1.msra.mxu0 0.0
  %402 = vmatprep.subr.mxu0 0.0
  %403 = vmatpush1.msra.mxu0 0.0
  %404 = vmatprep.subr.mxu0 0.0
  %405 = vmatpush1.msra.mxu0 0.0
  %406 = vmatprep.subr.mxu0 0.0
  %407 = vmatpush1.msra.mxu0 0.0
  %408 = vmatprep.subr.mxu0 0.0
  %409 = vmatpush1.msra.mxu0 0.0
  %410 = vmatprep.subr.mxu0 0.0
  %411 = vmatpush1.msra.mxu0 0.0
  %412 = vmatprep.subr.mxu0 0.0
  %413 = vmatpush1.msra.mxu0 0.0
  %414 = vmatprep.subr.mxu0 0.0
  %415 = vmatpush1.msra.mxu0 0.0
  %416 = vmatprep.subr.mxu0 0.0
  %417 = vmatpush1.msra.mxu0 0.0
  %418 = vmatprep.subr.mxu0 0.0
  %419 = vmatpush1.msra.mxu0 0.0
  %420 = vmatprep.mubr.f32.mxu0 0.0
  %421 = vmatmul.mubr.f32.gmra.mrb[0].mxu0 %v268
  %v422 = vpop.f32.mrb[0].mxu0
  %v423 = vadd.f32 0.0, %v422
  %v424 = vpop.f32.mrb[0].mxu0
  %425 = vmatprep.mubr.f32.mxu0 0.0
  %426 = vmatmul.mubr.f32.gmra.mrb[0].mxu0 %v271
  %v427 = vpop.f32.mrb[0].mxu0
  %v428 = vadd.f32 0.0, %v427
  %v429 = vpop.f32.mrb[0].mxu0
  %430 = vdwg.mxu0
  %v431 = vld [vmem:[%s7] sm:$0xff]
  %v432 = vld [vmem:[%s7 + $0x8] sm:$0xff]
  %v433 = vld [vmem:[%s7 + $0x10] sm:$0xff]
  %v434 = vld [vmem:[%s7 + $0x18] sm:$0xff]
  %v437 = vrot.slane %v423, 7
  %v438 = vrot.slane %v428, 7
  %v441 = vadd.f32 %v343, %v437
  %v442 = vadd.f32 %v348, %v438
  %v444 = vsel %vm69, 0.0, 0
  %446 = vmatprep.subr.mxu0 0.0
  %447 = vmatpush1.msra.mxu0 %v431
  %448 = vmatprep.subr.mxu0 0.0
  %449 = vmatpush1.msra.mxu0 %v432
  %450 = vmatprep.subr.mxu0 0.0
  %451 = vmatpush1.msra.mxu0 %v433
  %452 = vmatprep.subr.mxu0 0.0
  %453 = vmatpush1.msra.mxu0 %v434
  %454 = vmatprep.subr.mxu0 0.0
  %455 = vmatpush1.msra.mxu0 0.0
  %456 = vmatprep.subr.mxu0 0.0
  %457 = vmatpush1.msra.mxu0 0.0
  %458 = vmatprep.subr.mxu0 0.0
  %459 = vmatpush1.msra.mxu0 0.0
  %460 = vmatprep.subr.mxu0 0.0
  %461 = vmatpush1.msra.mxu0 0.0
  %462 = vmatprep.subr.mxu0 0.0
  %463 = vmatpush1.msra.mxu0 0.0
  %464 = vmatprep.subr.mxu0 0.0
  %465 = vmatpush1.msra.mxu0 0.0
  %466 = vmatprep.subr.mxu0 0.0
  %467 = vmatpush1.msra.mxu0 0.0
  %468 = vmatprep.subr.mxu0 0.0
  %469 = vmatpush1.msra.mxu0 0.0
  %470 = vmatprep.subr.mxu0 0.0
  %471 = vmatpush1.msra.mxu0 0.0
  %472 = vmatprep.subr.mxu0 0.0
  %473 = vmatpush1.msra.mxu0 0.0
  %474 = vmatprep.subr.mxu0 0.0
  %475 = vmatpush1.msra.mxu0 0.0
  %476 = vmatprep.subr.mxu0 0.0
  %477 = vmatpush1.msra.mxu0 0.0
  %478 = vmatprep.subr.mxu0 0.0
  %479 = vmatpush1.msra.mxu0 0.0
  %480 = vmatprep.subr.mxu0 0.0
  %481 = vmatpush1.msra.mxu0 0.0
  %482 = vmatprep.subr.mxu0 0.0
  %483 = vmatpush1.msra.mxu0 0.0
  %484 = vmatprep.subr.mxu0 0.0
  %485 = vmatpush1.msra.mxu0 0.0
  %486 = vmatprep.subr.mxu0 0.0
  %487 = vmatpush1.msra.mxu0 0.0
  %488 = vmatprep.subr.mxu0 0.0
  %489 = vmatpush1.msra.mxu0 0.0
  %490 = vmatprep.subr.mxu0 0.0
  %491 = vmatpush1.msra.mxu0 0.0
  %492 = vmatprep.subr.mxu0 0.0
  %493 = vmatpush1.msra.mxu0 0.0
  %494 = vmatprep.subr.mxu0 0.0
  %495 = vmatpush1.msra.mxu0 0.0
  %496 = vmatprep.subr.mxu0 0.0
  %497 = vmatpush1.msra.mxu0 0.0
  %498 = vmatprep.subr.mxu0 0.0
  %499 = vmatpush1.msra.mxu0 0.0
  %500 = vmatprep.subr.mxu0 0.0
  %501 = vmatpush1.msra.mxu0 0.0
  %502 = vmatprep.subr.mxu0 0.0
  %503 = vmatpush1.msra.mxu0 0.0
  %504 = vmatprep.subr.mxu0 0.0
  %505 = vmatpush1.msra.mxu0 0.0
  %506 = vmatprep.subr.mxu0 0.0
  %507 = vmatpush1.msra.mxu0 0.0
  %508 = vmatprep.subr.mxu0 0.0
  %509 = vmatpush1.msra.mxu0 0.0
  %510 = vmatprep.mubr.f32.mxu0 0.0
  %511 = vmatmul.mubr.f32.gmra.mrb[0].mxu0 %v444
  %v512 = vpop.f32.mrb[0].mxu0
  %v513 = vadd.f32 0.0, %v512
  %v514 = vpop.f32.mrb[0].mxu0
  %515 = vdwg.mxu0
  %v517 = vrot.slane %v513, 1
  %v520 = vadd.f32 %v441, %v513
  %v521 = vadd.f32 %v442, %v517
  %v522 = vxor.u32 %v520, 2147483648
  %v523 = vxor.u32 %v521, 2147483648
  %v524 = vmul.f32 %v522, 1.442695
  %v525 = vpow.pop %v524
  %v526 = vmul.f32 %v523, 1.442695
  %v527 = vpow.pop %v526
  %v528 = vadd.f32 %v525, 1.0
  %v529 = vadd.f32 %v527, 1.0
  %v530 = vrcp.pop %v528
  %v531 = vmul.f32 1.0, %v530
  %v532 = vrcp.pop %v529
  %v533 = vmul.f32 1.0, %v532
  %v534 = vtanh.pop %v520
  %v535 = vtanh.pop %v521
  %v536 = vmul.f32 %v531, 0.0
  %v537 = vmul.f32 %v533, 0.0
  %540 = vrot.lane.b32.xlu0 %v534, 32
  %v541 = vpop.permute.xlu0 %540
  %542 = vrot.lane.b32.xlu0 %v535, 32
  %v543 = vpop.permute.xlu0 %542
  %v546 = vmul.f32 %v531, %v541
  %v547 = vmul.f32 %v533, %v543
  %550 = vrot.lane.b32.xlu0 %v546, 32
  %v551 = vpop.permute.xlu0 %550
  %552 = vrot.lane.b32.xlu0 %v547, 32
  %v553 = vpop.permute.xlu0 %552
  %v556 = vadd.f32 %v536, %v551
  %v557 = vadd.f32 %v537, %v553
  %v558 = vtanh.pop %v556
  %v559 = vtanh.pop %v557
  %562 = vrot.lane.b32.xlu0 %v558, 32
  %v563 = vpop.permute.xlu0 %562
  %564 = vrot.lane.b32.xlu0 %v559, 32
  %v565 = vpop.permute.xlu0 %564
  %v568 = vmul.f32 %v531, %v563
  %v569 = vmul.f32 %v533, %v565
  %572 = vrot.lane.b32.xlu0 %v568, 64
  %v573 = vpop.permute.xlu0 %572
  %574 = vrot.lane.b32.xlu0 %v569, 64
  %v575 = vpop.permute.xlu0 %574
  %vm578 = vcmask 122880
  %579 = vst.msk [vmem:[#allocation2] sm:$0x1] %vm578, %v573
  %580 = vst.msk [vmem:[#allocation2 + $0x8] sm:$0x1] %vm578, %v575
  %vm581 = vcmask 254080
  %582 = vst.msk [vmem:[#allocation2 + $0x7] sm:$0x1] %vm581, %v573
  %583 = vst.msk [vmem:[#allocation2 + $0xf] sm:$0x1] %vm581, %v575
  %v584 = vrot.slane %v423, 5
  %v585 = vrot.slane %v428, 5
  %v588 = vadd.f32 %v343, %v584
  %v589 = vadd.f32 %v348, %v585
  %v590 = vrot.slane %v569, 7
  %vm591 = vcmask 1041409
  %v592 = vsel %vm591, %v590, %v568
  %593 = vrot.lane.b32.xlu0 %v592, 64
  %v594 = vpop.permute.xlu0 %593
  %v595 = vsel %vm69, %v594, 0
  %597 = vmatprep.subr.mxu0 0.0
  %598 = vmatpush1.msra.mxu0 %v431
  %599 = vmatprep.subr.mxu0 0.0
  %600 = vmatpush1.msra.mxu0 %v432
  %601 = vmatprep.subr.mxu0 0.0
  %602 = vmatpush1.msra.mxu0 %v433
  %603 = vmatprep.subr.mxu0 0.0
  %604 = vmatpush1.msra.mxu0 %v434
  %605 = vmatprep.subr.mxu0 0.0
  %606 = vmatpush1.msra.mxu0 0.0
  %607 = vmatprep.subr.mxu0 0.0
  %608 = vmatpush1.msra.mxu0 0.0
  %609 = vmatprep.subr.mxu0 0.0
  %610 = vmatpush1.msra.mxu0 0.0
  %611 = vmatprep.subr.mxu0 0.0
  %612 = vmatpush1.msra.mxu0 0.0
  %613 = vmatprep.subr.mxu0 0.0
  %614 = vmatpush1.msra.mxu0 0.0
  %615 = vmatprep.subr.mxu0 0.0
  %616 = vmatpush1.msra.mxu0 0.0
  %617 = vmatprep.subr.mxu0 0.0
  %618 = vmatpush1.msra.mxu0 0.0
  %619 = vmatprep.subr.mxu0 0.0
  %620 = vmatpush1.msra.mxu0 0.0
  %621 = vmatprep.subr.mxu0 0.0
  %622 = vmatpush1.msra.mxu0 0.0
  %623 = vmatprep.subr.mxu0 0.0
  %624 = vmatpush1.msra.mxu0 0.0
  %625 = vmatprep.subr.mxu0 0.0
  %626 = vmatpush1.msra.mxu0 0.0
  %627 = vmatprep.subr.mxu0 0.0
  %628 = vmatpush1.msra.mxu0 0.0
  %629 = vmatprep.subr.mxu0 0.0
  %630 = vmatpush1.msra.mxu0 0.0
  %631 = vmatprep.subr.mxu0 0.0
  %632 = vmatpush1.msra.mxu0 0.0
  %633 = vmatprep.subr.mxu0 0.0
  %634 = vmatpush1.msra.mxu0 0.0
  %635 = vmatprep.subr.mxu0 0.0
  %636 = vmatpush1.msra.mxu0 0.0
  %637 = vmatprep.subr.mxu0 0.0
  %638 = vmatpush1.msra.mxu0 0.0
  %639 = vmatprep.subr.mxu0 0.0
  %640 = vmatpush1.msra.mxu0 0.0
  %641 = vmatprep.subr.mxu0 0.0
  %642 = vmatpush1.msra.mxu0 0.0
  %643 = vmatprep.subr.mxu0 0.0
  %644 = vmatpush1.msra.mxu0 0.0
  %645 = vmatprep.subr.mxu0 0.0
  %646 = vmatpush1.msra.mxu0 0.0
  %647 = vmatprep.subr.mxu0 0.0
  %648 = vmatpush1.msra.mxu0 0.0
  %649 = vmatprep.subr.mxu0 0.0
  %650 = vmatpush1.msra.mxu0 0.0
  %651 = vmatprep.subr.mxu0 0.0
  %652 = vmatpush1.msra.mxu0 0.0
  %653 = vmatprep.subr.mxu0 0.0
  %654 = vmatpush1.msra.mxu0 0.0
  %655 = vmatprep.subr.mxu0 0.0
  %656 = vmatpush1.msra.mxu0 0.0
  %657 = vmatprep.subr.mxu0 0.0
  %658 = vmatpush1.msra.mxu0 0.0
  %659 = vmatprep.subr.mxu0 0.0
  %660 = vmatpush1.msra.mxu0 0.0
  %661 = vmatprep.mubr.f32.mxu0 0.0
  %662 = vmatmul.mubr.f32.gmra.mrb[0].mxu0 %v595
  %v663 = vpop.f32.mrb[0].mxu0
  %v664 = vadd.f32 0.0, %v663
  %v665 = vpop.f32.mrb[0].mxu0
  %666 = vdwg.mxu0
  %v668 = vrot.slane %v664, 7
  %v671 = vadd.f32 %v588, %v668
  %v672 = vadd.f32 %v589, %v664
  %v673 = vxor.u32 %v671, 2147483648
  %v674 = vxor.u32 %v672, 2147483648
  %v675 = vmul.f32 %v673, 1.442695
  %v676 = vpow.pop %v675
  %v677 = vmul.f32 %v674, 1.442695
  %v678 = vpow.pop %v677
  %v679 = vadd.f32 %v676, 1.0
  %v680 = vadd.f32 %v678, 1.0
  %v681 = vrcp.pop %v679
  %v682 = vmul.f32 1.0, %v681
  %v683 = vrcp.pop %v680
  %v684 = vmul.f32 1.0, %v683
  %v685 = vtanh.pop %v671
  %v686 = vtanh.pop %v672
  %v689 = vrot.slane %v556, 7
  %v690 = vrot.slane %v557, 7
  %v693 = vmul.f32 %v682, %v689
  %v694 = vmul.f32 %v684, %v690
  %697 = vrot.lane.b32.xlu0 %v685, 32
  %v698 = vpop.permute.xlu0 %697
  %699 = vrot.lane.b32.xlu0 %v686, 32
  %v700 = vpop.permute.xlu0 %699
  %v703 = vmul.f32 %v682, %v698
  %v704 = vmul.f32 %v684, %v700
  %707 = vrot.lane.b32.xlu0 %v703, 32
  %v708 = vpop.permute.xlu0 %707
  %709 = vrot.lane.b32.xlu0 %v704, 32
  %v710 = vpop.permute.xlu0 %709
  %v713 = vadd.f32 %v693, %v708
  %v714 = vadd.f32 %v694, %v710
  %v715 = vtanh.pop %v713
  %v716 = vtanh.pop %v714
  %719 = vrot.lane.b32.xlu0 %v715, 32
  %v720 = vpop.permute.xlu0 %719
  %721 = vrot.lane.b32.xlu0 %v716, 32
  %v722 = vpop.permute.xlu0 %721
  %v725 = vmul.f32 %v682, %v720
  %v726 = vmul.f32 %v684, %v722
  %729 = vrot.lane.b32.xlu0 %v725, 64
  %v730 = vpop.permute.xlu0 %729
  %731 = vrot.lane.b32.xlu0 %v726, 64
  %v732 = vpop.permute.xlu0 %731
  %vm735 = vcmask 123905
  %736 = vst.msk [vmem:[#allocation2] sm:$0x2] %vm735, %v730
  %737 = vst.msk [vmem:[#allocation2 + $0x8] sm:$0x2] %vm735, %v732
  %vm738 = vcmask 255105
  %739 = vst.msk [vmem:[#allocation2 + $0x5] sm:$0x2] %vm738, %v730
  %740 = vst.msk [vmem:[#allocation2 + $0xd] sm:$0x2] %vm738, %v732
  %v741 = vrot.slane %v423, 3
  %v742 = vrot.slane %v428, 3
  %v745 = vadd.f32 %v343, %v741
  %v746 = vadd.f32 %v348, %v742
  %v747 = vrot.slane %v725, 1
  %v748 = vsel %vm591, %v726, %v747
  %749 = vrot.lane.b32.xlu0 %v748, 64
  %v750 = vpop.permute.xlu0 %749
  %v751 = vsel %vm69, %v750, 0
  %753 = vmatprep.subr.mxu0 0.0
  %754 = vmatpush1.msra.mxu0 %v431
  %755 = vmatprep.subr.mxu0 0.0
  %756 = vmatpush1.msra.mxu0 %v432
  %757 = vmatprep.subr.mxu0 0.0
  %758 = vmatpush1.msra.mxu0 %v433
  %759 = vmatprep.subr.mxu0 0.0
  %760 = vmatpush1.msra.mxu0 %v434
  %761 = vmatprep.subr.mxu0 0.0
  %762 = vmatpush1.msra.mxu0 0.0
  %763 = vmatprep.subr.mxu0 0.0
  %764 = vmatpush1.msra.mxu0 0.0
  %765 = vmatprep.subr.mxu0 0.0
  %766 = vmatpush1.msra.mxu0 0.0
  %767 = vmatprep.subr.mxu0 0.0
  %768 = vmatpush1.msra.mxu0 0.0
  %769 = vmatprep.subr.mxu0 0.0
  %770 = vmatpush1.msra.mxu0 0.0
  %771 = vmatprep.subr.mxu0 0.0
  %772 = vmatpush1.msra.mxu0 0.0
  %773 = vmatprep.subr.mxu0 0.0
  %774 = vmatpush1.msra.mxu0 0.0
  %775 = vmatprep.subr.mxu0 0.0
  %776 = vmatpush1.msra.mxu0 0.0
  %777 = vmatprep.subr.mxu0 0.0
  %778 = vmatpush1.msra.mxu0 0.0
  %779 = vmatprep.subr.mxu0 0.0
  %780 = vmatpush1.msra.mxu0 0.0
  %781 = vmatprep.subr.mxu0 0.0
  %782 = vmatpush1.msra.mxu0 0.0
  %783 = vmatprep.subr.mxu0 0.0
  %784 = vmatpush1.msra.mxu0 0.0
  %785 = vmatprep.subr.mxu0 0.0
  %786 = vmatpush1.msra.mxu0 0.0
  %787 = vmatprep.subr.mxu0 0.0
  %788 = vmatpush1.msra.mxu0 0.0
  %789 = vmatprep.subr.mxu0 0.0
  %790 = vmatpush1.msra.mxu0 0.0
  %791 = vmatprep.subr.mxu0 0.0
  %792 = vmatpush1.msra.mxu0 0.0
  %793 = vmatprep.subr.mxu0 0.0
  %794 = vmatpush1.msra.mxu0 0.0
  %795 = vmatprep.subr.mxu0 0.0
  %796 = vmatpush1.msra.mxu0 0.0
  %797 = vmatprep.subr.mxu0 0.0
  %798 = vmatpush1.msra.mxu0 0.0
  %799 = vmatprep.subr.mxu0 0.0
  %800 = vmatpush1.msra.mxu0 0.0
  %801 = vmatprep.subr.mxu0 0.0
  %802 = vmatpush1.msra.mxu0 0.0
  %803 = vmatprep.subr.mxu0 0.0
  %804 = vmatpush1.msra.mxu0 0.0
  %805 = vmatprep.subr.mxu0 0.0
  %806 = vmatpush1.msra.mxu0 0.0
  %807 = vmatprep.subr.mxu0 0.0
  %808 = vmatpush1.msra.mxu0 0.0
  %809 = vmatprep.subr.mxu0 0.0
  %810 = vmatpush1.msra.mxu0 0.0
  %811 = vmatprep.subr.mxu0 0.0
  %812 = vmatpush1.msra.mxu0 0.0
  %813 = vmatprep.subr.mxu0 0.0
  %814 = vmatpush1.msra.mxu0 0.0
  %815 = vmatprep.subr.mxu0 0.0
  %816 = vmatpush1.msra.mxu0 0.0
  %817 = vmatprep.mubr.f32.mxu0 0.0
  %818 = vmatmul.mubr.f32.gmra.mrb[0].mxu0 %v751
  %v819 = vpop.f32.mrb[0].mxu0
  %v820 = vadd.f32 0.0, %v819
  %v821 = vpop.f32.mrb[0].mxu0
  %822 = vdwg.mxu0
  %v824 = vrot.slane %v820, 6
  %v825 = vrot.slane %v820, 7
  %v828 = vadd.f32 %v745, %v824
  %v829 = vadd.f32 %v746, %v825
  %v830 = vxor.u32 %v828, 2147483648
  %v831 = vxor.u32 %v829, 2147483648
  %v832 = vmul.f32 %v830, 1.442695
  %v833 = vpow.pop %v832
  %v834 = vmul.f32 %v831, 1.442695
  %v835 = vpow.pop %v834
  %v836 = vadd.f32 %v833, 1.0
  %v837 = vadd.f32 %v835, 1.0
  %v838 = vrcp.pop %v836
  %v839 = vmul.f32 1.0, %v838
  %v840 = vrcp.pop %v837
  %v841 = vmul.f32 1.0, %v840
  %v842 = vtanh.pop %v828
  %v843 = vtanh.pop %v829
  %v846 = vrot.slane %v713, 7
  %v847 = vrot.slane %v714, 7
  %v850 = vmul.f32 %v839, %v846
  %v851 = vmul.f32 %v841, %v847
  %854 = vrot.lane.b32.xlu0 %v842, 32
  %v855 = vpop.permute.xlu0 %854
  %856 = vrot.lane.b32.xlu0 %v843, 32
  %v857 = vpop.permute.xlu0 %856
  %v860 = vmul.f32 %v839, %v855
  %v861 = vmul.f32 %v841, %v857
  %864 = vrot.lane.b32.xlu0 %v860, 32
  %v865 = vpop.permute.xlu0 %864
  %866 = vrot.lane.b32.xlu0 %v861, 32
  %v867 = vpop.permute.xlu0 %866
  %v870 = vadd.f32 %v850, %v865
  %v871 = vadd.f32 %v851, %v867
  %v872 = vtanh.pop %v870
  %v873 = vtanh.pop %v871
  %876 = vrot.lane.b32.xlu0 %v872, 32
  %v877 = vpop.permute.xlu0 %876
  %878 = vrot.lane.b32.xlu0 %v873, 32
  %v879 = vpop.permute.xlu0 %878
  %v882 = vmul.f32 %v839, %v877
  %v883 = vmul.f32 %v841, %v879
  %886 = vrot.lane.b32.xlu0 %v882, 64
  %v887 = vpop.permute.xlu0 %886
  %888 = vrot.lane.b32.xlu0 %v883, 64
  %v889 = vpop.permute.xlu0 %888
  %vm892 = vcmask 124930
  %893 = vst.msk [vmem:[#allocation2] sm:$0x4] %vm892, %v887
  %894 = vst.msk [vmem:[#allocation2 + $0x8] sm:$0x4] %vm892, %v889
  %vm895 = vcmask 256130
  %896 = vst.msk [vmem:[#allocation2 + $0x3] sm:$0x4] %vm895, %v887
  %897 = vst.msk [vmem:[#allocation2 + $0xb] sm:$0x4] %vm895, %v889
  %v898 = vrot.slane %v423, 1
  %v899 = vrot.slane %v428, 1
  %v902 = vadd.f32 %v343, %v898
  %v903 = vadd.f32 %v348, %v899
  %v904 = vrot.slane %v882, 2
  %v905 = vrot.slane %v883, 1
  %v906 = vsel %vm591, %v905, %v904
  %907 = vrot.lane.b32.xlu0 %v906, 64
  %v908 = vpop.permute.xlu0 %907
  %v909 = vsel %vm69, %v908, 0
  %911 = vmatprep.subr.mxu0 0.0
  %912 = vmatpush1.msra.mxu0 %v431
  %913 = vmatprep.subr.mxu0 0.0
  %914 = vmatpush1.msra.mxu0 %v432
  %915 = vmatprep.subr.mxu0 0.0
  %916 = vmatpush1.msra.mxu0 %v433
  %917 = vmatprep.subr.mxu0 0.0
  %918 = vmatpush1.msra.mxu0 %v434
  %919 = vmatprep.subr.mxu0 0.0
  %920 = vmatpush1.msra.mxu0 0.0
  %921 = vmatprep.subr.mxu0 0.0
  %922 = vmatpush1.msra.mxu0 0.0
  %923 = vmatprep.subr.mxu0 0.0
  %924 = vmatpush1.msra.mxu0 0.0
  %925 = vmatprep.subr.mxu0 0.0
  %926 = vmatpush1.msra.mxu0 0.0
  %927 = vmatprep.subr.mxu0 0.0
  %928 = vmatpush1.msra.mxu0 0.0
  %929 = vmatprep.subr.mxu0 0.0
  %930 = vmatpush1.msra.mxu0 0.0
  %931 = vmatprep.subr.mxu0 0.0
  %932 = vmatpush1.msra.mxu0 0.0
  %933 = vmatprep.subr.mxu0 0.0
  %934 = vmatpush1.msra.mxu0 0.0
  %935 = vmatprep.subr.mxu0 0.0
  %936 = vmatpush1.msra.mxu0 0.0
  %937 = vmatprep.subr.mxu0 0.0
  %938 = vmatpush1.msra.mxu0 0.0
  %939 = vmatprep.subr.mxu0 0.0
  %940 = vmatpush1.msra.mxu0 0.0
  %941 = vmatprep.subr.mxu0 0.0
  %942 = vmatpush1.msra.mxu0 0.0
  %943 = vmatprep.subr.mxu0 0.0
  %944 = vmatpush1.msra.mxu0 0.0
  %945 = vmatprep.subr.mxu0 0.0
  %946 = vmatpush1.msra.mxu0 0.0
  %947 = vmatprep.subr.mxu0 0.0
  %948 = vmatpush1.msra.mxu0 0.0
  %949 = vmatprep.subr.mxu0 0.0
  %950 = vmatpush1.msra.mxu0 0.0
  %951 = vmatprep.subr.mxu0 0.0
  %952 = vmatpush1.msra.mxu0 0.0
  %953 = vmatprep.subr.mxu0 0.0
  %954 = vmatpush1.msra.mxu0 0.0
  %955 = vmatprep.subr.mxu0 0.0
  %956 = vmatpush1.msra.mxu0 0.0
  %957 = vmatprep.subr.mxu0 0.0
  %958 = vmatpush1.msra.mxu0 0.0
  %959 = vmatprep.subr.mxu0 0.0
  %960 = vmatpush1.msra.mxu0 0.0
  %961 = vmatprep.subr.mxu0 0.0
  %962 = vmatpush1.msra.mxu0 0.0
  %963 = vmatprep.subr.mxu0 0.0
  %964 = vmatpush1.msra.mxu0 0.0
  %965 = vmatprep.subr.mxu0 0.0
  %966 = vmatpush1.msra.mxu0 0.0
  %967 = vmatprep.subr.mxu0 0.0
  %968 = vmatpush1.msra.mxu0 0.0
  %969 = vmatprep.subr.mxu0 0.0
  %970 = vmatpush1.msra.mxu0 0.0
  %971 = vmatprep.subr.mxu0 0.0
  %972 = vmatpush1.msra.mxu0 0.0
  %973 = vmatprep.subr.mxu0 0.0
  %974 = vmatpush1.msra.mxu0 0.0
  %975 = vmatprep.mubr.f32.mxu0 0.0
  %976 = vmatmul.mubr.f32.gmra.mrb[0].mxu0 %v909
  %v977 = vpop.f32.mrb[0].mxu0
  %v978 = vadd.f32 0.0, %v977
  %v979 = vpop.f32.mrb[0].mxu0
  %980 = vdwg.mxu0
  %v982 = vrot.slane %v978, 5
  %v983 = vrot.slane %v978, 6
  %v986 = vadd.f32 %v902, %v982
  %v987 = vadd.f32 %v903, %v983
  %v988 = vxor.u32 %v986, 2147483648
  %v989 = vxor.u32 %v987, 2147483648
  %v990 = vmul.f32 %v988, 1.442695
  %v991 = vpow.pop %v990
  %v992 = vmul.f32 %v989, 1.442695
  %v993 = vpow.pop %v992
  %v994 = vadd.f32 %v991, 1.0
  %v995 = vadd.f32 %v993, 1.0
  %v996 = vrcp.pop %v994
  %v997 = vmul.f32 1.0, %v996
  %v998 = vrcp.pop %v995
  %v999 = vmul.f32 1.0, %v998
  %v1000 = vtanh.pop %v986
  %v1001 = vtanh.pop %v987
  %v1004 = vrot.slane %v870, 7
  %v1005 = vrot.slane %v871, 7
  %v1008 = vmul.f32 %v997, %v1004
  %v1009 = vmul.f32 %v999, %v1005
  %1012 = vrot.lane.b32.xlu0 %v1000, 32
  %v1013 = vpop.permute.xlu0 %1012
  %1014 = vrot.lane.b32.xlu0 %v1001, 32
  %v1015 = vpop.permute.xlu0 %1014
  %v1018 = vmul.f32 %v997, %v1013
  %v1019 = vmul.f32 %v999, %v1015
  %1022 = vrot.lane.b32.xlu0 %v1018, 32
  %v1023 = vpop.permute.xlu0 %1022
  %1024 = vrot.lane.b32.xlu0 %v1019, 32
  %v1025 = vpop.permute.xlu0 %1024
  %v1028 = vadd.f32 %v1008, %v1023
  %v1029 = vadd.f32 %v1009, %v1025
  %v1030 = vtanh.pop %v1028
  %v1031 = vtanh.pop %v1029
  %1034 = vrot.lane.b32.xlu0 %v1030, 32
  %v1035 = vpop.permute.xlu0 %1034
  %1036 = vrot.lane.b32.xlu0 %v1031, 32
  %v1037 = vpop.permute.xlu0 %1036
  %v1040 = vmul.f32 %v997, %v1035
  %v1041 = vmul.f32 %v999, %v1037
  %1044 = vrot.lane.b32.xlu0 %v1040, 64
  %v1045 = vpop.permute.xlu0 %1044
  %1046 = vrot.lane.b32.xlu0 %v1041, 64
  %v1047 = vpop.permute.xlu0 %1046
  %vm1050 = vcmask 125955
  %1051 = vst.msk [vmem:[#allocation2] sm:$0x8] %vm1050, %v1045
  %1052 = vst.msk [vmem:[#allocation2 + $0x8] sm:$0x8] %vm1050, %v1047
  %vm1053 = vcmask 257155
  %1054 = vst.msk [vmem:[#allocation2 + $0x1] sm:$0x8] %vm1053, %v1045
  %1055 = vst.msk [vmem:[#allocation2 + $0x9] sm:$0x8] %vm1053, %v1047
  %v1056 = vrot.slane %v1040, 3
  %v1057 = vrot.slane %v1041, 2
  %v1058 = vsel %vm591, %v1057, %v1056
  %1059 = vrot.lane.b32.xlu0 %v1058, 64
  %v1060 = vpop.permute.xlu0 %1059
  %v1061 = vsel %vm69, %v1060, 0
  %1063 = vmatprep.subr.mxu0 0.0
  %1064 = vmatpush1.msra.mxu0 %v431
  %1065 = vmatprep.subr.mxu0 0.0
  %1066 = vmatpush1.msra.mxu0 %v432
  %1067 = vmatprep.subr.mxu0 0.0
  %1068 = vmatpush1.msra.mxu0 %v433
  %1069 = vmatprep.subr.mxu0 0.0
  %1070 = vmatpush1.msra.mxu0 %v434
  %1071 = vmatprep.subr.mxu0 0.0
  %1072 = vmatpush1.msra.mxu0 0.0
  %1073 = vmatprep.subr.mxu0 0.0
  %1074 = vmatpush1.msra.mxu0 0.0
  %1075 = vmatprep.subr.mxu0 0.0
  %1076 = vmatpush1.msra.mxu0 0.0
  %1077 = vmatprep.subr.mxu0 0.0
  %1078 = vmatpush1.msra.mxu0 0.0
  %1079 = vmatprep.subr.mxu0 0.0
  %1080 = vmatpush1.msra.mxu0 0.0
  %1081 = vmatprep.subr.mxu0 0.0
  %1082 = vmatpush1.msra.mxu0 0.0
  %1083 = vmatprep.subr.mxu0 0.0
  %1084 = vmatpush1.msra.mxu0 0.0
  %1085 = vmatprep.subr.mxu0 0.0
  %1086 = vmatpush1.msra.mxu0 0.0
  %1087 = vmatprep.subr.mxu0 0.0
  %1088 = vmatpush1.msra.mxu0 0.0
  %1089 = vmatprep.subr.mxu0 0.0
  %1090 = vmatpush1.msra.mxu0 0.0
  %1091 = vmatprep.subr.mxu0 0.0
  %1092 = vmatpush1.msra.mxu0 0.0
  %1093 = vmatprep.subr.mxu0 0.0
  %1094 = vmatpush1.msra.mxu0 0.0
  %1095 = vmatprep.subr.mxu0 0.0
  %1096 = vmatpush1.msra.mxu0 0.0
  %1097 = vmatprep.subr.mxu0 0.0
  %1098 = vmatpush1.msra.mxu0 0.0
  %1099 = vmatprep.subr.mxu0 0.0
  %1100 = vmatpush1.msra.mxu0 0.0
  %1101 = vmatprep.subr.mxu0 0.0
  %1102 = vmatpush1.msra.mxu0 0.0
  %1103 = vmatprep.subr.mxu0 0.0
  %1104 = vmatpush1.msra.mxu0 0.0
  %1105 = vmatprep.subr.mxu0 0.0
  %1106 = vmatpush1.msra.mxu0 0.0
  %1107 = vmatprep.subr.mxu0 0.0
  %1108 = vmatpush1.msra.mxu0 0.0
  %1109 = vmatprep.subr.mxu0 0.0
  %1110 = vmatpush1.msra.mxu0 0.0
  %1111 = vmatprep.subr.mxu0 0.0
  %1112 = vmatpush1.msra.mxu0 0.0
  %1113 = vmatprep.subr.mxu0 0.0
  %1114 = vmatpush1.msra.mxu0 0.0
  %1115 = vmatprep.subr.mxu0 0.0
  %1116 = vmatpush1.msra.mxu0 0.0
  %1117 = vmatprep.subr.mxu0 0.0
  %1118 = vmatpush1.msra.mxu0 0.0
  %1119 = vmatprep.subr.mxu0 0.0
  %1120 = vmatpush1.msra.mxu0 0.0
  %1121 = vmatprep.subr.mxu0 0.0
  %1122 = vmatpush1.msra.mxu0 0.0
  %1123 = vmatprep.subr.mxu0 0.0
  %1124 = vmatpush1.msra.mxu0 0.0
  %1125 = vmatprep.subr.mxu0 0.0
  %1126 = vmatpush1.msra.mxu0 0.0
  %1127 = vmatprep.mubr.f32.mxu0 0.0
  %1128 = vmatmul.mubr.f32.gmra.mrb[0].mxu0 %v1061
  %v1129 = vpop.f32.mrb[0].mxu0
  %v1130 = vadd.f32 0.0, %v1129
  %v1131 = vpop.f32.mrb[0].mxu0
  %1132 = vdwg.mxu0
  %v1134 = vrot.slane %v1130, 4
  %v1135 = vrot.slane %v1130, 5
  %v1138 = vadd.f32 %v441, %v1134
  %v1139 = vadd.f32 %v442, %v1135
  %v1140 = vxor.u32 %v1138, 2147483648
  %v1141 = vxor.u32 %v1139, 2147483648
  %v1142 = vmul.f32 %v1140, 1.442695
  %v1143 = vpow.pop %v1142
  %v1144 = vmul.f32 %v1141, 1.442695
  %v1145 = vpow.pop %v1144
  %v1146 = vadd.f32 %v1143, 1.0
  %v1147 = vadd.f32 %v1145, 1.0
  %v1148 = vrcp.pop %v1146
  %v1149 = vmul.f32 1.0, %v1148
  %v1150 = vrcp.pop %v1147
  %v1151 = vmul.f32 1.0, %v1150
  %v1152 = vtanh.pop %v1138
  %v1153 = vtanh.pop %v1139
  %v1156 = vrot.slane %v1028, 7
  %v1157 = vrot.slane %v1029, 7
  %v1160 = vmul.f32 %v1149, %v1156
  %v1161 = vmul.f32 %v1151, %v1157
  %1164 = vrot.lane.b32.xlu0 %v1152, 32
  %v1165 = vpop.permute.xlu0 %1164
  %1166 = vrot.lane.b32.xlu0 %v1153, 32
  %v1167 = vpop.permute.xlu0 %1166
  %v1170 = vmul.f32 %v1149, %v1165
  %v1171 = vmul.f32 %v1151, %v1167
  %1174 = vrot.lane.b32.xlu0 %v1170, 32
  %v1175 = vpop.permute.xlu0 %1174
  %1176 = vrot.lane.b32.xlu0 %v1171, 32
  %v1177 = vpop.permute.xlu0 %1176
  %v1180 = vadd.f32 %v1160, %v1175
  %v1181 = vadd.f32 %v1161, %v1177
  %v1182 = vtanh.pop %v1180
  %v1183 = vtanh.pop %v1181
  %1186 = vrot.lane.b32.xlu0 %v1182, 32
  %v1187 = vpop.permute.xlu0 %1186
  %1188 = vrot.lane.b32.xlu0 %v1183, 32
  %v1189 = vpop.permute.xlu0 %1188
  %v1192 = vmul.f32 %v1149, %v1187
  %v1193 = vmul.f32 %v1151, %v1189
  %1196 = vrot.lane.b32.xlu0 %v1192, 64
  %v1197 = vpop.permute.xlu0 %1196
  %1198 = vrot.lane.b32.xlu0 %v1193, 64
  %v1199 = vpop.permute.xlu0 %1198
  %vm1202 = vcmask 126980
  %1203 = vst.msk [vmem:[#allocation2] sm:$0x10] %vm1202, %v1197
  %1204 = vst.msk [vmem:[#allocation2 + $0x8] sm:$0x10] %vm1202, %v1199
  %vm1205 = vcmask 258180
  %1206 = vst.msk [vmem:[#allocation2 - $0x1] sm:$0x10] %vm1205, %v1197
  %1207 = vst.msk [vmem:[#allocation2 + $0x7] sm:$0x10] %vm1205, %v1199
  %v1208 = vrot.slane %v1192, 4
  %v1209 = vrot.slane %v1193, 3
  %v1210 = vsel %vm591, %v1209, %v1208
  %1211 = vrot.lane.b32.xlu0 %v1210, 64
  %v1212 = vpop.permute.xlu0 %1211
  %v1213 = vsel %vm69, %v1212, 0
  %1215 = vmatprep.subr.mxu0 0.0
  %1216 = vmatpush1.msra.mxu0 %v431
  %1217 = vmatprep.subr.mxu0 0.0
  %1218 = vmatpush1.msra.mxu0 %v432
  %1219 = vmatprep.subr.mxu0 0.0
  %1220 = vmatpush1.msra.mxu0 %v433
  %1221 = vmatprep.subr.mxu0 0.0
  %1222 = vmatpush1.msra.mxu0 %v434
  %1223 = vmatprep.subr.mxu0 0.0
  %1224 = vmatpush1.msra.mxu0 0.0
  %1225 = vmatprep.subr.mxu0 0.0
  %1226 = vmatpush1.msra.mxu0 0.0
  %1227 = vmatprep.subr.mxu0 0.0
  %1228 = vmatpush1.msra.mxu0 0.0
  %1229 = vmatprep.subr.mxu0 0.0
  %1230 = vmatpush1.msra.mxu0 0.0
  %1231 = vmatprep.subr.mxu0 0.0
  %1232 = vmatpush1.msra.mxu0 0.0
  %1233 = vmatprep.subr.mxu0 0.0
  %1234 = vmatpush1.msra.mxu0 0.0
  %1235 = vmatprep.subr.mxu0 0.0
  %1236 = vmatpush1.msra.mxu0 0.0
  %1237 = vmatprep.subr.mxu0 0.0
  %1238 = vmatpush1.msra.mxu0 0.0
  %1239 = vmatprep.subr.mxu0 0.0
  %1240 = vmatpush1.msra.mxu0 0.0
  %1241 = vmatprep.subr.mxu0 0.0
  %1242 = vmatpush1.msra.mxu0 0.0
  %1243 = vmatprep.subr.mxu0 0.0
  %1244 = vmatpush1.msra.mxu0 0.0
  %1245 = vmatprep.subr.mxu0 0.0
  %1246 = vmatpush1.msra.mxu0 0.0
  %1247 = vmatprep.subr.mxu0 0.0
  %1248 = vmatpush1.msra.mxu0 0.0
  %1249 = vmatprep.subr.mxu0 0.0
  %1250 = vmatpush1.msra.mxu0 0.0
  %1251 = vmatprep.subr.mxu0 0.0
  %1252 = vmatpush1.msra.mxu0 0.0
  %1253 = vmatprep.subr.mxu0 0.0
  %1254 = vmatpush1.msra.mxu0 0.0
  %1255 = vmatprep.subr.mxu0 0.0
  %1256 = vmatpush1.msra.mxu0 0.0
  %1257 = vmatprep.subr.mxu0 0.0
  %1258 = vmatpush1.msra.mxu0 0.0
  %1259 = vmatprep.subr.mxu0 0.0
  %1260 = vmatpush1.msra.mxu0 0.0
  %1261 = vmatprep.subr.mxu0 0.0
  %1262 = vmatpush1.msra.mxu0 0.0
  %1263 = vmatprep.subr.mxu0 0.0
  %1264 = vmatpush1.msra.mxu0 0.0
  %1265 = vmatprep.subr.mxu0 0.0
  %1266 = vmatpush1.msra.mxu0 0.0
  %1267 = vmatprep.subr.mxu0 0.0
  %1268 = vmatpush1.msra.mxu0 0.0
  %1269 = vmatprep.subr.mxu0 0.0
  %1270 = vmatpush1.msra.mxu0 0.0
  %1271 = vmatprep.subr.mxu0 0.0
  %1272 = vmatpush1.msra.mxu0 0.0
  %1273 = vmatprep.subr.mxu0 0.0
  %1274 = vmatpush1.msra.mxu0 0.0
  %1275 = vmatprep.subr.mxu0 0.0
  %1276 = vmatpush1.msra.mxu0 0.0
  %1277 = vmatprep.subr.mxu0 0.0
  %1278 = vmatpush1.msra.mxu0 0.0
  %1279 = vmatprep.mubr.f32.mxu0 0.0
  %1280 = vmatmul.mubr.f32.gmra.mrb[0].mxu0 %v1213
  %v1281 = vpop.f32.mrb[0].mxu0
  %v1282 = vadd.f32 0.0, %v1281
  %v1283 = vpop.f32.mrb[0].mxu0
  %1284 = vdwg.mxu0
  %v1286 = vrot.slane %v1282, 3
  %v1287 = vrot.slane %v1282, 4
  %v1290 = vadd.f32 %v588, %v1286
  %v1291 = vadd.f32 %v589, %v1287
  %v1292 = vxor.u32 %v1290, 2147483648
  %v1293 = vxor.u32 %v1291, 2147483648
  %v1294 = vmul.f32 %v1292, 1.442695
  %v1295 = vpow.pop %v1294
  %v1296 = vmul.f32 %v1293, 1.442695
  %v1297 = vpow.pop %v1296
  %v1298 = vadd.f32 %v1295, 1.0
  %v1299 = vadd.f32 %v1297, 1.0
  %v1300 = vrcp.pop %v1298
  %v1301 = vmul.f32 1.0, %v1300
  %v1302 = vrcp.pop %v1299
  %v1303 = vmul.f32 1.0, %v1302
  %v1304 = vtanh.pop %v1290
  %v1305 = vtanh.pop %v1291
  %v1308 = vrot.slane %v1180, 7
  %v1309 = vrot.slane %v1181, 7
  %v1312 = vmul.f32 %v1301, %v1308
  %v1313 = vmul.f32 %v1303, %v1309
  %1316 = vrot.lane.b32.xlu0 %v1304, 32
  %v1317 = vpop.permute.xlu0 %1316
  %1318 = vrot.lane.b32.xlu0 %v1305, 32
  %v1319 = vpop.permute.xlu0 %1318
  %v1322 = vmul.f32 %v1301, %v1317
  %v1323 = vmul.f32 %v1303, %v1319
  %1326 = vrot.lane.b32.xlu0 %v1322, 32
  %v1327 = vpop.permute.xlu0 %1326
  %1328 = vrot.lane.b32.xlu0 %v1323, 32
  %v1329 = vpop.permute.xlu0 %1328
  %v1332 = vadd.f32 %v1312, %v1327
  %v1333 = vadd.f32 %v1313, %v1329
  %v1334 = vtanh.pop %v1332
  %v1335 = vtanh.pop %v1333
  %1338 = vrot.lane.b32.xlu0 %v1334, 32
  %v1339 = vpop.permute.xlu0 %1338
  %1340 = vrot.lane.b32.xlu0 %v1335, 32
  %v1341 = vpop.permute.xlu0 %1340
  %v1344 = vmul.f32 %v1301, %v1339
  %v1345 = vmul.f32 %v1303, %v1341
  %1348 = vrot.lane.b32.xlu0 %v1344, 64
  %v1349 = vpop.permute.xlu0 %1348
  %1350 = vrot.lane.b32.xlu0 %v1345, 64
  %v1351 = vpop.permute.xlu0 %1350
  %vm1354 = vcmask 128005
  %1355 = vst.msk [vmem:[#allocation2] sm:$0x20] %vm1354, %v1349
  %1356 = vst.msk [vmem:[#allocation2 + $0x8] sm:$0x20] %vm1354, %v1351
  %vm1357 = vcmask 259205
  %1358 = vst.msk [vmem:[#allocation2 - $0x3] sm:$0x20] %vm1357, %v1349
  %1359 = vst.msk [vmem:[#allocation2 + $0x5] sm:$0x20] %vm1357, %v1351
  %v1360 = vrot.slane %v1344, 5
  %v1361 = vrot.slane %v1345, 4
  %v1362 = vsel %vm591, %v1361, %v1360
  %1363 = vrot.lane.b32.xlu0 %v1362, 64
  %v1364 = vpop.permute.xlu0 %1363
  %v1365 = vsel %vm69, %v1364, 0
  %1367 = vmatprep.subr.mxu0 0.0
  %1368 = vmatpush1.msra.mxu0 %v431
  %1369 = vmatprep.subr.mxu0 0.0
  %1370 = vmatpush1.msra.mxu0 %v432
  %1371 = vmatprep.subr.mxu0 0.0
  %1372 = vmatpush1.msra.mxu0 %v433
  %1373 = vmatprep.subr.mxu0 0.0
  %1374 = vmatpush1.msra.mxu0 %v434
  %1375 = vmatprep.subr.mxu0 0.0
  %1376 = vmatpush1.msra.mxu0 0.0
  %1377 = vmatprep.subr.mxu0 0.0
  %1378 = vmatpush1.msra.mxu0 0.0
  %1379 = vmatprep.subr.mxu0 0.0
  %1380 = vmatpush1.msra.mxu0 0.0
  %1381 = vmatprep.subr.mxu0 0.0
  %1382 = vmatpush1.msra.mxu0 0.0
  %1383 = vmatprep.subr.mxu0 0.0
  %1384 = vmatpush1.msra.mxu0 0.0
  %1385 = vmatprep.subr.mxu0 0.0
  %1386 = vmatpush1.msra.mxu0 0.0
  %1387 = vmatprep.subr.mxu0 0.0
  %1388 = vmatpush1.msra.mxu0 0.0
  %1389 = vmatprep.subr.mxu0 0.0
  %1390 = vmatpush1.msra.mxu0 0.0
  %1391 = vmatprep.subr.mxu0 0.0
  %1392 = vmatpush1.msra.mxu0 0.0
  %1393 = vmatprep.subr.mxu0 0.0
  %1394 = vmatpush1.msra.mxu0 0.0
  %1395 = vmatprep.subr.mxu0 0.0
  %1396 = vmatpush1.msra.mxu0 0.0
  %1397 = vmatprep.subr.mxu0 0.0
  %1398 = vmatpush1.msra.mxu0 0.0
  %1399 = vmatprep.subr.mxu0 0.0
  %1400 = vmatpush1.msra.mxu0 0.0
  %1401 = vmatprep.subr.mxu0 0.0
  %1402 = vmatpush1.msra.mxu0 0.0
  %1403 = vmatprep.subr.mxu0 0.0
  %1404 = vmatpush1.msra.mxu0 0.0
  %1405 = vmatprep.subr.mxu0 0.0
  %1406 = vmatpush1.msra.mxu0 0.0
  %1407 = vmatprep.subr.mxu0 0.0
  %1408 = vmatpush1.msra.mxu0 0.0
  %1409 = vmatprep.subr.mxu0 0.0
  %1410 = vmatpush1.msra.mxu0 0.0
  %1411 = vmatprep.subr.mxu0 0.0
  %1412 = vmatpush1.msra.mxu0 0.0
  %1413 = vmatprep.subr.mxu0 0.0
  %1414 = vmatpush1.msra.mxu0 0.0
  %1415 = vmatprep.subr.mxu0 0.0
  %1416 = vmatpush1.msra.mxu0 0.0
  %1417 = vmatprep.subr.mxu0 0.0
  %1418 = vmatpush1.msra.mxu0 0.0
  %1419 = vmatprep.subr.mxu0 0.0
  %1420 = vmatpush1.msra.mxu0 0.0
  %1421 = vmatprep.subr.mxu0 0.0
  %1422 = vmatpush1.msra.mxu0 0.0
  %1423 = vmatprep.subr.mxu0 0.0
  %1424 = vmatpush1.msra.mxu0 0.0
  %1425 = vmatprep.subr.mxu0 0.0
  %1426 = vmatpush1.msra.mxu0 0.0
  %1427 = vmatprep.subr.mxu0 0.0
  %1428 = vmatpush1.msra.mxu0 0.0
  %1429 = vmatprep.subr.mxu0 0.0
  %1430 = vmatpush1.msra.mxu0 0.0
  %1431 = vmatprep.mubr.f32.mxu0 0.0
  %1432 = vmatmul.mubr.f32.gmra.mrb[0].mxu0 %v1365
  %v1433 = vpop.f32.mrb[0].mxu0
  %v1434 = vadd.f32 0.0, %v1433
  %v1435 = vpop.f32.mrb[0].mxu0
  %1436 = vdwg.mxu0
  %v1438 = vrot.slane %v1434, 2
  %v1439 = vrot.slane %v1434, 3
  %v1442 = vadd.f32 %v745, %v1438
  %v1443 = vadd.f32 %v746, %v1439
  %v1444 = vxor.u32 %v1442, 2147483648
  %v1445 = vxor.u32 %v1443, 2147483648
  %v1446 = vmul.f32 %v1444, 1.442695
  %v1447 = vpow.pop %v1446
  %v1448 = vmul.f32 %v1445, 1.442695
  %v1449 = vpow.pop %v1448
  %v1450 = vadd.f32 %v1447, 1.0
  %v1451 = vadd.f32 %v1449, 1.0
  %v1452 = vrcp.pop %v1450
  %v1453 = vmul.f32 1.0, %v1452
  %v1454 = vrcp.pop %v1451
  %v1455 = vmul.f32 1.0, %v1454
  %v1456 = vtanh.pop %v1442
  %v1457 = vtanh.pop %v1443
  %v1460 = vrot.slane %v1332, 7
  %v1461 = vrot.slane %v1333, 7
  %v1464 = vmul.f32 %v1453, %v1460
  %v1465 = vmul.f32 %v1455, %v1461
  %1468 = vrot.lane.b32.xlu0 %v1456, 32
  %v1469 = vpop.permute.xlu0 %1468
  %1470 = vrot.lane.b32.xlu0 %v1457, 32
  %v1471 = vpop.permute.xlu0 %1470
  %v1474 = vmul.f32 %v1453, %v1469
  %v1475 = vmul.f32 %v1455, %v1471
  %1478 = vrot.lane.b32.xlu0 %v1474, 32
  %v1479 = vpop.permute.xlu0 %1478
  %1480 = vrot.lane.b32.xlu0 %v1475, 32
  %v1481 = vpop.permute.xlu0 %1480
  %v1484 = vadd.f32 %v1464, %v1479
  %v1485 = vadd.f32 %v1465, %v1481
  %v1486 = vtanh.pop %v1484
  %v1487 = vtanh.pop %v1485
  %1490 = vrot.lane.b32.xlu0 %v1486, 32
  %v1491 = vpop.permute.xlu0 %1490
  %1492 = vrot.lane.b32.xlu0 %v1487, 32
  %v1493 = vpop.permute.xlu0 %1492
  %v1496 = vmul.f32 %v1453, %v1491
  %v1497 = vmul.f32 %v1455, %v1493
  %1500 = vrot.lane.b32.xlu0 %v1496, 64
  %v1501 = vpop.permute.xlu0 %1500
  %1502 = vrot.lane.b32.xlu0 %v1497, 64
  %v1503 = vpop.permute.xlu0 %1502
  %vm1506 = vcmask 129030
  %1507 = vst.msk [vmem:[#allocation2] sm:$0x40] %vm1506, %v1501
  %1508 = vst.msk [vmem:[#allocation2 + $0x8] sm:$0x40] %vm1506, %v1503
  %vm1509 = vcmask 260230
  %1510 = vst.msk [vmem:[#allocation2 - $0x5] sm:$0x40] %vm1509, %v1501
  %1511 = vst.msk [vmem:[#allocation2 + $0x3] sm:$0x40] %vm1509, %v1503
  %v1512 = vrot.slane %v1496, 6
  %v1513 = vrot.slane %v1497, 5
  %v1514 = vsel %vm591, %v1513, %v1512
  %1515 = vrot.lane.b32.xlu0 %v1514, 64
  %v1516 = vpop.permute.xlu0 %1515
  %v1517 = vsel %vm69, %v1516, 0
  %1519 = vmatprep.subr.mxu0 0.0
  %1520 = vmatpush1.msra.mxu0 %v431
  %1521 = vmatprep.subr.mxu0 0.0
  %1522 = vmatpush1.msra.mxu0 %v432
  %1523 = vmatprep.subr.mxu0 0.0
  %1524 = vmatpush1.msra.mxu0 %v433
  %1525 = vmatprep.subr.mxu0 0.0
  %1526 = vmatpush1.msra.mxu0 %v434
  %1527 = vmatprep.subr.mxu0 0.0
  %1528 = vmatpush1.msra.mxu0 0.0
  %1529 = vmatprep.subr.mxu0 0.0
  %1530 = vmatpush1.msra.mxu0 0.0
  %1531 = vmatprep.subr.mxu0 0.0
  %1532 = vmatpush1.msra.mxu0 0.0
  %1533 = vmatprep.subr.mxu0 0.0
  %1534 = vmatpush1.msra.mxu0 0.0
  %1535 = vmatprep.subr.mxu0 0.0
  %1536 = vmatpush1.msra.mxu0 0.0
  %1537 = vmatprep.subr.mxu0 0.0
  %1538 = vmatpush1.msra.mxu0 0.0
  %1539 = vmatprep.subr.mxu0 0.0
  %1540 = vmatpush1.msra.mxu0 0.0
  %1541 = vmatprep.subr.mxu0 0.0
  %1542 = vmatpush1.msra.mxu0 0.0
  %1543 = vmatprep.subr.mxu0 0.0
  %1544 = vmatpush1.msra.mxu0 0.0
  %1545 = vmatprep.subr.mxu0 0.0
  %1546 = vmatpush1.msra.mxu0 0.0
  %1547 = vmatprep.subr.mxu0 0.0
  %1548 = vmatpush1.msra.mxu0 0.0
  %1549 = vmatprep.subr.mxu0 0.0
  %1550 = vmatpush1.msra.mxu0 0.0
  %1551 = vmatprep.subr.mxu0 0.0
  %1552 = vmatpush1.msra.mxu0 0.0
  %1553 = vmatprep.subr.mxu0 0.0
  %1554 = vmatpush1.msra.mxu0 0.0
  %1555 = vmatprep.subr.mxu0 0.0
  %1556 = vmatpush1.msra.mxu0 0.0
  %1557 = vmatprep.subr.mxu0 0.0
  %1558 = vmatpush1.msra.mxu0 0.0
  %1559 = vmatprep.subr.mxu0 0.0
  %1560 = vmatpush1.msra.mxu0 0.0
  %1561 = vmatprep.subr.mxu0 0.0
  %1562 = vmatpush1.msra.mxu0 0.0
  %1563 = vmatprep.subr.mxu0 0.0
  %1564 = vmatpush1.msra.mxu0 0.0
  %1565 = vmatprep.subr.mxu0 0.0
  %1566 = vmatpush1.msra.mxu0 0.0
  %1567 = vmatprep.subr.mxu0 0.0
  %1568 = vmatpush1.msra.mxu0 0.0
  %1569 = vmatprep.subr.mxu0 0.0
  %1570 = vmatpush1.msra.mxu0 0.0
  %1571 = vmatprep.subr.mxu0 0.0
  %1572 = vmatpush1.msra.mxu0 0.0
  %1573 = vmatprep.subr.mxu0 0.0
  %1574 = vmatpush1.msra.mxu0 0.0
  %1575 = vmatprep.subr.mxu0 0.0
  %1576 = vmatpush1.msra.mxu0 0.0
  %1577 = vmatprep.subr.mxu0 0.0
  %1578 = vmatpush1.msra.mxu0 0.0
  %1579 = vmatprep.subr.mxu0 0.0
  %1580 = vmatpush1.msra.mxu0 0.0
  %1581 = vmatprep.subr.mxu0 0.0
  %1582 = vmatpush1.msra.mxu0 0.0
  %1583 = vmatprep.mubr.f32.mxu0 0.0
  %1584 = vmatmul.mubr.f32.gmra.mrb[0].mxu0 %v1517
  %v1585 = vpop.f32.mrb[0].mxu0
  %v1586 = vadd.f32 0.0, %v1585
  %v1587 = vpop.f32.mrb[0].mxu0
  %1588 = vdwg.mxu0
  %v1590 = vrot.slane %v1586, 1
  %v1591 = vrot.slane %v1586, 2
  %v1594 = vadd.f32 %v902, %v1590
  %v1595 = vadd.f32 %v903, %v1591
  %v1596 = vxor.u32 %v1594, 2147483648
  %v1597 = vxor.u32 %v1595, 2147483648
  %v1598 = vmul.f32 %v1596, 1.442695
  %v1599 = vpow.pop %v1598
  %v1600 = vmul.f32 %v1597, 1.442695
  %v1601 = vpow.pop %v1600
  %v1602 = vadd.f32 %v1599, 1.0
  %v1603 = vadd.f32 %v1601, 1.0
  %v1604 = vrcp.pop %v1602
  %v1605 = vmul.f32 1.0, %v1604
  %v1606 = vrcp.pop %v1603
  %v1607 = vmul.f32 1.0, %v1606
  %v1608 = vtanh.pop %v1594
  %v1609 = vtanh.pop %v1595
  %v1612 = vrot.slane %v1484, 7
  %v1613 = vrot.slane %v1485, 7
  %v1616 = vmul.f32 %v1605, %v1612
  %v1617 = vmul.f32 %v1607, %v1613
  %1620 = vrot.lane.b32.xlu0 %v1608, 32
  %v1621 = vpop.permute.xlu0 %1620
  %1622 = vrot.lane.b32.xlu0 %v1609, 32
  %v1623 = vpop.permute.xlu0 %1622
  %v1626 = vmul.f32 %v1605, %v1621
  %v1627 = vmul.f32 %v1607, %v1623
  %1630 = vrot.lane.b32.xlu0 %v1626, 32
  %v1631 = vpop.permute.xlu0 %1630
  %1632 = vrot.lane.b32.xlu0 %v1627, 32
  %v1633 = vpop.permute.xlu0 %1632
  %v1636 = vadd.f32 %v1616, %v1631
  %v1637 = vadd.f32 %v1617, %v1633
  %v1638 = vtanh.pop %v1636
  %v1639 = vtanh.pop %v1637
  %1642 = vrot.lane.b32.xlu0 %v1638, 32
  %v1643 = vpop.permute.xlu0 %1642
  %1644 = vrot.lane.b32.xlu0 %v1639, 32
  %v1645 = vpop.permute.xlu0 %1644
  %v1648 = vmul.f32 %v1605, %v1643
  %v1649 = vmul.f32 %v1607, %v1645
  %1652 = vrot.lane.b32.xlu0 %v1648, 64
  %v1653 = vpop.permute.xlu0 %1652
  %1654 = vrot.lane.b32.xlu0 %v1649, 64
  %v1655 = vpop.permute.xlu0 %1654
  %vm1658 = vcmask 130055
  %1659 = vst.msk [vmem:[#allocation2] sm:$0x80] %vm1658, %v1653
  %1660 = vst.msk [vmem:[#allocation2 + $0x8] sm:$0x80] %vm1658, %v1655
  %vm1661 = vcmask 261255
  %1662 = vst.msk [vmem:[#allocation2 - $0x7] sm:$0x80] %vm1661, %v1653
  %1663 = vst.msk [vmem:[#allocation2 + $0x1] sm:$0x80] %vm1661, %v1655
  %v1664 = vld [vmem:[#allocation2] sm:$0xff]
  %v1665 = vld [vmem:[#allocation2 + $0x8] sm:$0xff]
  %v1666 = vld [vmem:[%s8] sm:$0xff]
  %v1667 = vld [vmem:[%s8 + $0x8] sm:$0xff]
  %v1668 = vld [vmem:[%s8 + $0x10] sm:$0xff]
  %v1669 = vld [vmem:[%s8 + $0x18] sm:$0xff]
  %v1670 = vld [vmem:[%s9] sm:$0x1]
  %v1672 = vlaneseq
  %v1673 = vshrl.u32 %v1672, 7
  %v1674 = vsub.s32 0, %v1673
  %v1675 = vrot.slane %v1670, %v1674
  %v1678 = vsel %vm69, %v1664, 0
  %v1681 = vsel %vm69, %v1665, 0
  %1683 = vmatprep.subr.mxu0 0.0
  %1684 = vmatpush1.msra.mxu0 %v1666
  %1685 = vmatprep.subr.mxu0 0.0
  %1686 = vmatpush1.msra.mxu0 %v1667
  %1687 = vmatprep.subr.mxu0 0.0
  %1688 = vmatpush1.msra.mxu0 %v1668
  %1689 = vmatprep.subr.mxu0 0.0
  %1690 = vmatpush1.msra.mxu0 %v1669
  %1691 = vmatprep.subr.mxu0 0.0
  %1692 = vmatpush1.msra.mxu0 0.0
  %1693 = vmatprep.subr.mxu0 0.0
  %1694 = vmatpush1.msra.mxu0 0.0
  %1695 = vmatprep.subr.mxu0 0.0
  %1696 = vmatpush1.msra.mxu0 0.0
  %1697 = vmatprep.subr.mxu0 0.0
  %1698 = vmatpush1.msra.mxu0 0.0
  %1699 = vmatprep.subr.mxu0 0.0
  %1700 = vmatpush1.msra.mxu0 0.0
  %1701 = vmatprep.subr.mxu0 0.0
  %1702 = vmatpush1.msra.mxu0 0.0
  %1703 = vmatprep.subr.mxu0 0.0
  %1704 = vmatpush1.msra.mxu0 0.0
  %1705 = vmatprep.subr.mxu0 0.0
  %1706 = vmatpush1.msra.mxu0 0.0
  %1707 = vmatprep.subr.mxu0 0.0
  %1708 = vmatpush1.msra.mxu0 0.0
  %1709 = vmatprep.subr.mxu0 0.0
  %1710 = vmatpush1.msra.mxu0 0.0
  %1711 = vmatprep.subr.mxu0 0.0
  %1712 = vmatpush1.msra.mxu0 0.0
  %1713 = vmatprep.subr.mxu0 0.0
  %1714 = vmatpush1.msra.mxu0 0.0
  %1715 = vmatprep.subr.mxu0 0.0
  %1716 = vmatpush1.msra.mxu0 0.0
  %1717 = vmatprep.subr.mxu0 0.0
  %1718 = vmatpush1.msra.mxu0 0.0
  %1719 = vmatprep.subr.mxu0 0.0
  %1720 = vmatpush1.msra.mxu0 0.0
  %1721 = vmatprep.subr.mxu0 0.0
  %1722 = vmatpush1.msra.mxu0 0.0
  %1723 = vmatprep.subr.mxu0 0.0
  %1724 = vmatpush1.msra.mxu0 0.0
  %1725 = vmatprep.subr.mxu0 0.0
  %1726 = vmatpush1.msra.mxu0 0.0
  %1727 = vmatprep.subr.mxu0 0.0
  %1728 = vmatpush1.msra.mxu0 0.0
  %1729 = vmatprep.subr.mxu0 0.0
  %1730 = vmatpush1.msra.mxu0 0.0
  %1731 = vmatprep.subr.mxu0 0.0
  %1732 = vmatpush1.msra.mxu0 0.0
  %1733 = vmatprep.subr.mxu0 0.0
  %1734 = vmatpush1.msra.mxu0 0.0
  %1735 = vmatprep.subr.mxu0 0.0
  %1736 = vmatpush1.msra.mxu0 0.0
  %1737 = vmatprep.subr.mxu0 0.0
  %1738 = vmatpush1.msra.mxu0 0.0
  %1739 = vmatprep.subr.mxu0 0.0
  %1740 = vmatpush1.msra.mxu0 0.0
  %1741 = vmatprep.subr.mxu0 0.0
  %1742 = vmatpush1.msra.mxu0 0.0
  %1743 = vmatprep.subr.mxu0 0.0
  %1744 = vmatpush1.msra.mxu0 0.0
  %1745 = vmatprep.subr.mxu0 0.0
  %1746 = vmatpush1.msra.mxu0 0.0
  %1747 = vmatprep.mubr.f32.mxu0 0.0
  %1748 = vmatmul.mubr.f32.gmra.mrb[0].mxu0 %v1678
  %v1749 = vpop.f32.mrb[0].mxu0
  %v1750 = vadd.f32 %v1675, %v1749
  %v1751 = vpop.f32.mrb[0].mxu0
  %1752 = vmatprep.mubr.f32.mxu0 0.0
  %1753 = vmatmul.mubr.f32.gmra.mrb[0].mxu0 %v1681
  %v1754 = vpop.f32.mrb[0].mxu0
  %v1755 = vadd.f32 %v1675, %v1754
  %v1756 = vpop.f32.mrb[0].mxu0
  %1757 = vdwg.mxu0
  %vm1758 = vcmask 31744
  %1759 = vst.msk [vmem:[%s10] sm:$0xff] %vm1758, %v1750
  %1760 = vst.msk [vmem:[%s10 + $0x8] sm:$0xff] %vm1758, %v1755
  // Predicated region
  $region42: #{forward.1} parent=0 // pred_check
    _
  $region43: #{forward.1} parent=0 // pred_check_branch
    %1762 = sbr.rel (0) target = $region45
  $region44: #{forward.1} parent=0 // pred_region
    _
  $region45: #{forward.1} parent=0 // pred_fallthru
    _
  // Predicated region
  $region46: #{forward.1} parent=0 // pred_check
    _
  $region47: #{forward.1} parent=0 // pred_check_branch
    %1764 = sbr.rel (0) target = $region49
  $region48: #{forward.1} parent=0 // pred_region
    _
  $region49: #{forward.1} parent=0 // pred_fallthru
    _

</llo_original>
